<compile_context>
chip_gen: v6e
topology: v6e:2x2x1
jax: 0.10.0
libtpu: 0.0.40
codegen_flags: <defaults>
</compile_context>

<pallas_src>
import numpy as np
import jax
import jax.numpy as jnp
from jax import lax
from jax.experimental import pallas as pl
from jax.experimental.pallas import tpu as pltpu

FACTORS = [1, 1, 1, 1, 1 / 2, 1 / 4, 1 / 8, 1 / 16, 1 / 32, 1 / 64]
LEAKY_SLOPE = 0.01
LANES = 128


def _rup(c, m=LANES):
    return ((c + m - 1) // m) * m


# --------------------------- generation-aware VMEM budget ---------------------------

_VMEM_LIMIT = None


def _vmem_limit_bytes():
    """vmem_limit_bytes derived from the chip (64 MiB on v7x, 128 MiB on v5e/v6e)."""
    global _VMEM_LIMIT
    if _VMEM_LIMIT is None:
        limit = 48 * 1024 * 1024                      # safe default if the query fails
        try:
            cap = int(getattr(pltpu.get_tpu_info(), "vmem_capacity_bytes", 0) or 0)
            if cap > 0:
                limit = min(max(cap * 3 // 4, 32 * 1024 * 1024), 112 * 1024 * 1024)
        except Exception:
            pass
        _VMEM_LIMIT = limit
    return _VMEM_LIMIT


# --------------------------- fused conv kernel ---------------------------

def _build_conv_kernel(Nb, H, W, Cin, Cout, KH, KW, pad, has_bias, leaky, apply_px,
                       c_real, fuse_pool, fuse_linear, use_im2col, out_dtype):
    """Stride-1 conv on a tile of Nb images with fused epilogues.

    Ref order: x, w2d, [bias], [lin_w, lin_b], out, [xpad scratch].
    bf16 MXU operands, f32 accumulator/epilogue, `out_dtype` stores.
    """
    Hp, Wp = H + 2 * pad, W + 2 * pad
    Ho, Wo = Hp - KH + 1, Wp - KW + 1
    Hh, Wh = Ho // 2, Wo // 2
    M = Nb * Ho * Wo

    def kernel(*refs):
        it = iter(refs)
        x_ref = next(it)
        w_ref = next(it)
        b_ref = next(it) if has_bias else None
        lw_ref = next(it) if fuse_linear else None
        lb_ref = next(it) if fuse_linear else None
        o_ref = next(it)
        xpad_ref = next(it) if pad > 0 else None

        if pad > 0:
            # zero only the halo strips; the interior is overwritten right after.
            zrow = jnp.zeros((Nb, pad, Wp, Cin), jnp.bfloat16)
            zcol = jnp.zeros((Nb, H, pad, Cin), jnp.bfloat16)
            xpad_ref[:, 0:pad, :, :] = zrow
            xpad_ref[:, pad + H:Hp, :, :] = zrow
            xpad_ref[:, pad:pad + H, 0:pad, :] = zcol
            xpad_ref[:, pad:pad + H, pad + W:Wp, :] = zcol
            xpad_ref[:, pad:pad + H, pad:pad + W, :] = x_ref[...]
            src = xpad_ref
        else:
            src = x_ref

        if use_im2col:
            # K-packed: im2col in VMEM -> one (M, KH*KW*Cin) x (KH*KW*Cin, Cout) matmul.
            taps = [src[:, kh:kh + Ho, kw:kw + Wo, :]
                    for kh in range(KH) for kw in range(KW)]
            pm = jnp.concatenate(taps, axis=-1).reshape(M, KH * KW * Cin)
            acc = jnp.dot(pm, w_ref[...], preferred_element_type=jnp.float32)
        else:
            # fallback: one matmul per tap, batch still folded into M.
            acc = jnp.zeros((M, Cout), jnp.float32)
            for kh in range(KH):
                for kw in range(KW):
                    patch = src[:, kh:kh + Ho, kw:kw + Wo, :].reshape(M, Cin)
                    wtap = w_ref[(kh * KW + kw) * Cin:(kh * KW + kw + 1) * Cin, :]
                    acc = acc + jnp.dot(patch, wtap,
                                        preferred_element_type=jnp.float32)

        if has_bias:
            acc = acc + b_ref[...]                                  # (1, Cout) broadcast
        if leaky:
            acc = jnp.maximum(acc, LEAKY_SLOPE * acc)               # LeakyReLU(0.01)
        if apply_px:                                                # PixelNorm (real channels)
            ms = jnp.sum(acc * acc, axis=-1, keepdims=True) * (1.0 / c_real)
            acc = acc * lax.rsqrt(ms + 1e-8)

        if fuse_linear:
            # Ho == Wo == 1: Flatten + Linear(nc, 1) folded into the epilogue.
            o_ref[...] = (jnp.dot(acc, lw_ref[...], preferred_element_type=jnp.float32)
                          + lb_ref[...]).astype(out_dtype)
        elif fuse_pool:
            # 2x2/2 MaxPool directly on the f32 accumulator (no scratch round-trip).
            y = acc.reshape(Nb, Ho, Wo, Cout)
            r = jnp.maximum(y[:, 0:Ho:2, :, :], y[:, 1:Ho:2, :, :])
            o_ref[...] = jnp.maximum(r[:, :, 0:Wo:2, :], r[:, :, 1:Wo:2, :]).astype(out_dtype)
        else:
            o_ref[...] = acc.reshape(Nb, Ho, Wo, Cout).astype(out_dtype)

    return kernel


def conv2d_pallas(x, prep, padding, *, leaky=False, apply_px=False, pool=False,
                  linear=None, fast=True):
    """NHWC stride-1 conv with fused epilogues. `prep` holds pre-folded bf16 weights."""
    w2d, bias = prep['w2d'], prep['bias']
    KH, KW, c_real = prep['kh'], prep['kw'], prep['c_real']
    Ktot, Cout = w2d.shape
    Cin = Ktot // (KH * KW)
    x = x.astype(jnp.bfloat16)
    assert x.shape[-1] == Cin

    lane_dense = (Cin % LANES == 0)
    pad_in_kernel = fast and lane_dense and padding > 0
    use_im2col = fast and lane_dense
    fuse_pool = pool and fast
    fuse_linear = linear is not None

    pad_inside = padding if pad_in_kernel else 0
    if padding > 0 and not pad_in_kernel:
        x = jnp.pad(x, ((0, 0), (padding, padding), (padding, padding), (0, 0)))

    N, H, W, _ = x.shape
    Hp, Wp = H + 2 * pad_inside, W + 2 * pad_inside
    Ho, Wo = Hp - KH + 1, Wp - KW + 1
    if fuse_linear:
        assert Ho == 1 and Wo == 1 and not pool and not apply_px
    if pool:
        assert Ho % 2 == 0 and Wo % 2 == 0
    Hh, Wh = Ho // 2, Wo // 2
    has_bias = bias is not None

    # Batch tile: fold as many images as fit the VMEM budget into one grid step.
    bytes_per_image = (2 * 2 * H * W * Cin            # double-buffered bf16 input
                       + 2 * Hp * Wp * Cin            # pad scratch
                       + (2 * Ho * Wo * Ktot if use_im2col else 0)   # im2col intermediate
                       + 4 * Ho * Wo * Cout           # f32 accumulator
                       + 2 * 2 * Ho * Wo * Cout)      # double-buffered bf16 output
    budget = _vmem_limit_bytes() // 2
    Nb = 1
    for d in range(1, N + 1):
        if N % d == 0 and d * bytes_per_image <= budget:
            Nb = d

    in_specs = [pl.BlockSpec((Nb, H, W, Cin), lambda n: (n, 0, 0, 0)),
                pl.BlockSpec((Ktot, Cout), lambda n: (0, 0))]
    args = [x, w2d]
    if has_bias:
        in_specs.append(pl.BlockSpec((1, Cout), lambda n: (0, 0)))
        args.append(bias)
    if fuse_linear:
        lw, lb = linear
        in_specs.append(pl.BlockSpec((Cout, 1), lambda n: (0, 0)))
        in_specs.append(pl.BlockSpec((1, 1), lambda n: (0, 0)))
        args += [lw, lb]

    scratch = []
    if pad_inside > 0:
        scratch.append(pltpu.VMEM((Nb, Hp, Wp, Cin), jnp.bfloat16))

    if fuse_linear:
        out_shape = jax.ShapeDtypeStruct((N, 1), jnp.float32)
        out_spec = pl.BlockSpec((Nb, 1), lambda n: (n, 0))
        out_dtype = jnp.float32
    elif fuse_pool:
        out_shape = jax.ShapeDtypeStruct((N, Hh, Wh, Cout), jnp.bfloat16)
        out_spec = pl.BlockSpec((Nb, Hh, Wh, Cout), lambda n: (n, 0, 0, 0))
        out_dtype = jnp.bfloat16
    else:
        out_shape = jax.ShapeDtypeStruct((N, Ho, Wo, Cout), jnp.bfloat16)
        out_spec = pl.BlockSpec((Nb, Ho, Wo, Cout), lambda n: (n, 0, 0, 0))
        out_dtype = jnp.bfloat16

    kernel = _build_conv_kernel(Nb, H, W, Cin, Cout, KH, KW, pad_inside, has_bias,
                                leaky, apply_px, c_real, fuse_pool, fuse_linear,
                                use_im2col, out_dtype)
    # TODO(synk): for real ProGAN resolutions (>=256x256) add an output-row grid axis with
    # a (KH-1)-row halo index_map (second "parallel" axis also keeps both v7x cores busy).
    out = pl.pallas_call(
        kernel,
        out_shape=out_shape,
        grid=(N // Nb,),
        in_specs=in_specs,
        out_specs=out_spec,
        scratch_shapes=scratch,
        compiler_params=pltpu.CompilerParams(
            dimension_semantics=("parallel",),
            vmem_limit_bytes=_vmem_limit_bytes()),
    )(*args)

    if pool and not fast:
        out = maxpool2x2_pallas(out)
    return out


# --------------------------- maxpool fallback kernel ---------------------------

def _maxpool_kernel(a_ref, b_ref, c_ref, d_ref, o_ref):
    a = a_ref[...].astype(jnp.float32)
    b = b_ref[...].astype(jnp.float32)
    c = c_ref[...].astype(jnp.float32)
    d = d_ref[...].astype(jnp.float32)
    o_ref[...] = jnp.maximum(jnp.maximum(a, b), jnp.maximum(c, d)).astype(o_ref.dtype)


def maxpool2x2_pallas(x):
    # used only when the fused in-register pool is unavailable
    a = x[:, 0::2, 0::2, :]
    b = x[:, 0::2, 1::2, :]
    c = x[:, 1::2, 0::2, :]
    d = x[:, 1::2, 1::2, :]
    return pl.pallas_call(
        _maxpool_kernel,
        out_shape=jax.ShapeDtypeStruct(a.shape, x.dtype),
    )(a, b, c, d)


# --------------------------- pure-JAX reference ---------------------------

def conv2d_ref(x, w, scale, padding, bias=None, leaky=False):
    # Same bf16 operand quantization the Pallas kernels use, f32 accumulation.
    y = lax.conv_general_dilated(
        x.astype(jnp.bfloat16), (w * scale).astype(jnp.bfloat16), (1, 1),
        [(padding, padding), (padding, padding)],
        dimension_numbers=('NHWC', 'HWIO', 'NHWC'),
        preferred_element_type=jnp.float32)
    if bias is not None:
        y = y + bias.reshape(1, 1, 1, -1)
    if leaky:
        y = jnp.maximum(y, LEAKY_SLOPE * y)
    return y


def pixelnorm_ref(x):
    return x / jnp.sqrt(jnp.mean(x * x, axis=-1, keepdims=True) + 1e-8)


def maxpool2x2_ref(x):
    return lax.reduce_window(x, -jnp.inf, lax.max, (1, 2, 2, 1), (1, 2, 2, 1), 'VALID')


# --------------------------- parameters ---------------------------

def _prep_conv(w, scale, bias=None, cin_pad=None, cout_pad=None):
    """Fold equalized-lr scale, zero-pad channels to lane multiples, cast to bf16 and
    reshape HWIO -> (KH*KW*Cin_pad, Cout_pad).  Done once, at init."""
    KH, KW, Cin, Cout = w.shape
    cin_pad = Cin if cin_pad is None else cin_pad
    cout_pad = _rup(Cout) if cout_pad is None else cout_pad
    wf = jnp.zeros((KH, KW, cin_pad, cout_pad), jnp.float32)
    wf = wf.at[:, :, :Cin, :Cout].set(w * scale)
    prep = {'w2d': wf.reshape(KH * KW * cin_pad, cout_pad).astype(jnp.bfloat16),
            'kh': KH, 'kw': KW, 'c_real': Cout, 'bias': None}
    if bias is not None:
        prep['bias'] = jnp.zeros((1, cout_pad), jnp.float32).at[0, :Cout].set(bias)
    return prep


def _prepare_pallas_params(params, im_channels):
    # TODO(synk): at real resolutions, replace the 3->128 channel pad of the RGB input with
    # a channels-on-sublanes from_rgb layout instead of padding (42x VMEM/DMA at 1024px).
    cpad = _rup(im_channels)
    pp = {'from_rgb': [], 'blocks': []}
    for fr in params['from_rgb']:
        p = _prep_conv(fr['w'], fr['scale'], fr.get('bias'), cin_pad=cpad)
        p['padding'] = fr['padding']
        pp['from_rgb'].append(p)
    for blk in params['blocks']:
        c1, c2 = blk['conv1'], blk['conv2']
        pp['blocks'].append({
            'conv1': _prep_conv(c1['w'], c1['scale'], cin_pad=_rup(c1['w'].shape[2])),
            'conv2': _prep_conv(c2['w'], c2['scale'], cin_pad=_rup(c2['w'].shape[2]))})
    lfr = params['last_from_rgb']
    pp['last_from_rgb'] = _prep_conv(lfr['w'], lfr['scale'], cin_pad=cpad)
    ll = params['last_layer']
    nc = ll['lin_w'].shape[0]
    lw = jnp.zeros((_rup(nc), 1), jnp.float32).at[:nc, :].set(ll['lin_w'])
    pp['last_layer'] = {
        'conv1': _prep_conv(ll['conv1']['w'], ll['conv1']['scale'],
                            cin_pad=_rup(ll['conv1']['w'].shape[2])),
        'conv2': _prep_conv(ll['conv2']['w'], ll['conv2']['scale'],
                            cin_pad=_rup(ll['conv2']['w'].shape[2])),
        'lin_w': lw, 'lin_b': ll['lin_b'].astype(jnp.float32)}
    return pp


def init_discriminator_params(key, noise_channels=64, im_channels=3,
                              num_blocks=9, gain=2):
    keys = iter(jax.random.split(key, 4 * num_blocks + 8))

    def eq_conv(cin, cout, k):
        # EqualizedConvLayer: weight ~ N(0,1) (HWIO), bias zeroed & never applied.
        w = jax.random.normal(next(keys), (k, k, cin, cout), jnp.float32)
        scale = (gain / (cin * k * k)) ** 0.5
        return {'w': w, 'scale': scale}

    params = {'num_blocks': num_blocks, 'from_rgb': [], 'blocks': []}
    c0 = int(noise_channels * FACTORS[num_blocks - 1])
    # from_rgb[0]: plain nn.Conv2d(im_channels, c0, kernel=1) WITH bias
    params['from_rgb'].append({
        'w': 0.1 * jax.random.normal(next(keys), (1, 1, im_channels, c0), jnp.float32),
        'scale': 1.0,
        'bias': 0.01 * jax.random.normal(next(keys), (c0,), jnp.float32),
        'padding': 0})
    for i in range(num_blocks - 1, 0, -1):
        cin = int(noise_channels * FACTORS[i])
        cout = int(noise_channels * FACTORS[i - 1])
        params['blocks'].append({'conv1': eq_conv(cin, cin, 3),     # conv1_disc
                                 'conv2': eq_conv(cin, cout, 3)})   # conv2_disc
        params['from_rgb'].append({**eq_conv(im_channels, cout, 3),
                                   'bias': None, 'padding': 1})
    params['last_from_rgb'] = eq_conv(im_channels, noise_channels, 3)
    params['last_layer'] = {
        'conv1': eq_conv(noise_channels, noise_channels, 3),
        'conv2': eq_conv(noise_channels, noise_channels, 4),
        'lin_w': 0.1 * jax.random.normal(next(keys), (noise_channels, 1), jnp.float32),
        'lin_b': 0.01 * jax.random.normal(next(keys), (1, 1), jnp.float32)}
    params['pallas'] = _prepare_pallas_params(params, im_channels)
    return params


# --------------------------- fast-path capability probe ---------------------------

_FAST = None


def _fast_path_ok():
    """Validate the lowering-sensitive fast path (in-kernel halo pad, lane concat im2col,
    in-register strided pooling, fused linear) once; fall back if anything disagrees."""
    global _FAST
    if _FAST is None:
        try:
            kw3, kb, kx1, kx2, kw4, kl, kx3 = jax.random.split(jax.random.PRNGKey(7), 7)
            tol = dict(rtol=2e-2, atol=2e-2)
            ok = True
            w3 = 0.06 * jax.random.normal(kw3, (3, 3, 128, 128), jnp.float32)
            b3 = 0.01 * jax.random.normal(kb, (128,), jnp.float32)
            p3 = _prep_conv(w3, 1.0, b3)
            # (a) 8x8: halo pad + K-packed im2col + fused bias/leaky/pixelnorm/pool
            x = jax.random.normal(kx1, (2, 8, 8, 128), jnp.float32)
            out = conv2d_pallas(x, p3, 1, leaky=True, apply_px=True, pool=True, fast=True)
            ref = maxpool2x2_ref(pixelnorm_ref(conv2d_ref(x, w3, 1.0, 1, bias=b3, leaky=True)))
            ok &= bool(jnp.allclose(out.astype(jnp.float32), ref, **tol))
            # (b) 4x4 (output width not a sublane multiple), same structural path, no pool
            x = jax.random.normal(kx2, (2, 4, 4, 128), jnp.float32)
            out = conv2d_pallas(x, p3, 1, fast=True)
            ref = conv2d_ref(x, w3, 1.0, 1, bias=b3)
            ok &= bool(jnp.allclose(out.astype(jnp.float32), ref, **tol))
            # (c) 4x4 kernel, pad 0, fused Flatten+Linear tail
            w4 = 0.03 * jax.random.normal(kw4, (4, 4, 128, 128), jnp.float32)
            p4 = _prep_conv(w4, 1.0)
            lw = 0.1 * jax.random.normal(kl, (128, 1), jnp.float32)
            lb = jnp.zeros((1, 1), jnp.float32)
            x = jax.random.normal(kx3, (2, 4, 4, 128), jnp.float32)
            out = conv2d_pallas(x, p4, 0, linear=(lw, lb), fast=True)
            ref = jnp.dot(conv2d_ref(x, w4, 1.0, 0).reshape(2, 128), lw,
                          precision=lax.Precision.HIGHEST) + lb
            ok &= bool(jnp.allclose(out, ref, **tol))
            _FAST = bool(ok)
        except Exception:
            _FAST = False
    return _FAST


# --------------------------- forward pass ---------------------------

def _last_layer_pallas(o, pll, fast):
    o = conv2d_pallas(o, pll['conv1'], 1, fast=fast)
    # 4x4/pad0 conv -> 1x1 spatial; Flatten + Linear(nc, 1) fused into its epilogue.
    return conv2d_pallas(o, pll['conv2'], 0, linear=(pll['lin_w'], pll['lin_b']), fast=fast)


def _conv_block_ref(o, blk, apply_px):
    o = conv2d_ref(o, blk['conv1']['w'], blk['conv1']['scale'], 1, leaky=True)
    if apply_px:
        o = pixelnorm_ref(o)
    o = conv2d_ref(o, blk['conv2']['w'], blk['conv2']['scale'], 1, leaky=True)
    if apply_px:
        o = pixelnorm_ref(o)
    return maxpool2x2_ref(o)


def _last_layer_ref(o, ll):
    o = conv2d_ref(o, ll['conv1']['w'], ll['conv1']['scale'], 1)
    o = conv2d_ref(o, ll['conv2']['w'], ll['conv2']['scale'], 0)
    o = o.reshape(o.shape[0], -1)
    return jnp.dot(o, ll['lin_w'], precision=lax.Precision.HIGHEST) + ll['lin_b']


def discriminator_forward(params, x_nchw, step=0, alpha=0.5, apply_px=False,
                          use_pallas=True):
    # `alpha` is accepted but unused, exactly like the original PyTorch forward.
    num_blocks = params['num_blocks']
    x = jnp.transpose(x_nchw.astype(jnp.float32), (0, 2, 3, 1))  # NCHW -> NHWC

    if use_pallas:
        fast = _fast_path_ok()
        pp = params['pallas']
        c = x.shape[-1]
        if c % LANES:                                  # lane-dense RGB input (zero padded)
            x = jnp.pad(x, ((0, 0), (0, 0), (0, 0), (0, _rup(c) - c)))
        if step == 0:
            o = conv2d_pallas(x, pp['last_from_rgb'], 1, fast=fast)
            return _last_layer_pallas(o, pp['last_layer'], fast)
        frgb = pp['from_rgb'][num_blocks - 1 - step]
        # NOTE: no activation after from_rgb (matches the original PyTorch forward).
        o = conv2d_pallas(x, frgb, frgb['padding'], fast=fast)
        s = step
        while s > 0:
            blk = pp['blocks'][num_blocks - 1 - s]
            o = conv2d_pallas(o, blk['conv1'], 1, leaky=True, apply_px=apply_px, fast=fast)
            o = conv2d_pallas(o, blk['conv2'], 1, leaky=True, apply_px=apply_px,
                              pool=True, fast=fast)
            s -= 1
        return _last_layer_pallas(o, pp['last_layer'], fast)

    # --- pure-JAX reference path ---
    if step == 0:
        o = conv2d_ref(x, params['last_from_rgb']['w'], params['last_from_rgb']['scale'], 1)
        return _last_layer_ref(o, params['last_layer'])
    frgb = params['from_rgb'][num_blocks - 1 - step]
    o = conv2d_ref(x, frgb['w'], frgb['scale'], frgb['padding'], bias=frgb['bias'])
    s = step
    while s > 0:
        o = _conv_block_ref(o, params['blocks'][num_blocks - 1 - s], apply_px)
        s -= 1
    return _last_layer_ref(o, params['last_layer'])


# --------------------------- main ---------------------------

if __name__ == "__main__":
    key = jax.random.PRNGKey(0)
    pkey, k0, k1, k2 = jax.random.split(key, 4)

    NC = 64   # scaled-down noise_channels (module default is 512)
    NB = 3    # scaled-down num_blocks (module default is 9) -> max demo res 16x16
    params = init_discriminator_params(pkey, noise_channels=NC, im_channels=3,
                                       num_blocks=NB)

    checks = [
        (0, jax.random.normal(k0, (2, 3, 4, 4), jnp.float32), False),    # 4x4 tail path
        (1, jax.random.normal(k1, (2, 3, 8, 8), jnp.float32), False),    # eq from_rgb + 1 block
        (2, jax.random.normal(k2, (2, 3, 16, 16), jnp.float32), False),  # biased 1x1 from_rgb + 2 blocks
        (1, jax.random.normal(k1, (2, 3, 8, 8), jnp.float32), True),     # fused PixelNorm path
    ]
    for step, x, px in checks:
        out = discriminator_forward(params, x, step=step, apply_px=px)
        jax.block_until_ready(out)
        ref = discriminator_forward(params, x, step=step, apply_px=px,
                                    use_pallas=False)
        assert out.shape == (2, 1)
        np.testing.assert_allclose(np.asarray(out), np.asarray(ref),
                                   rtol=2e-2, atol=2e-2)

    print("KERNEL_OK")
</pallas_src>

<mosaic_0001>
module attributes {stable_mosaic.version = 11 : i64} {
  func.func @kernel(%arg0: i32, %arg1: memref<2x6x6x128xbf16, #tpu.memory_space<vmem>>, %arg2: memref<1152x128xbf16, #tpu.memory_space<vmem>>, %arg3: memref<2x4x4x128xbf16, #tpu.memory_space<vmem>>) attributes {dimension_semantics = [#tpu.dimension_semantics<parallel>], iteration_bounds = array<i64: 1>, scalar_prefetch = 0 : i64, scratch_operands = 0 : i64, tpu.core_type = #tpu.core_type<tc>, window_params = [{transform_indices = @transform_0, window_bounds = array<i64: 2, 6, 6, 128>}, {pipeline_mode = #tpu.pipeline_mode<synchronous>, transform_indices = @transform_1, window_bounds = array<i64: 1152, 128>}, {transform_indices = @transform_2, window_bounds = array<i64: 2, 4, 4, 128>}]} {
    %cst = arith.constant 0.000000e+00 : f32
    %0 = vector.broadcast %cst : f32 to vector<32x128xf32>
    %c0 = arith.constant 0 : index
    %c0_0 = arith.constant 0 : index
    %c0_1 = arith.constant 0 : index
    %c0_2 = arith.constant 0 : index
    %1 = vector.load %arg1[%c0, %c0_0, %c0_1, %c0_2] : memref<2x6x6x128xbf16, #tpu.memory_space<vmem>>, vector<2x4x4x128xbf16>
    %2 = vector.shape_cast %1 : vector<2x4x4x128xbf16> to vector<32x128xbf16>
    %c0_3 = arith.constant 0 : index
    %c0_4 = arith.constant 0 : index
    %3 = vector.load %arg2[%c0_3, %c0_4] : memref<1152x128xbf16, #tpu.memory_space<vmem>>, vector<128x128xbf16>
    %cst_5 = arith.constant dense<0.000000e+00> : vector<32x128xf32>
    %4 = tpu.matmul %2, %3, %cst_5 {dimension_numbers = #tpu.dot_dimension_numbers<[1], [0], [0], [1], [0, 0, 1, 1], [], []>} : vector<32x128xbf16>, vector<128x128xbf16>, vector<32x128xf32> -> vector<32x128xf32>
    %5 = arith.addf %0, %4 : vector<32x128xf32>
    %c0_6 = arith.constant 0 : index
    %c0_7 = arith.constant 0 : index
    %c1 = arith.constant 1 : index
    %c0_8 = arith.constant 0 : index
    %6 = vector.load %arg1[%c0_6, %c0_7, %c1, %c0_8] : memref<2x6x6x128xbf16, #tpu.memory_space<vmem>>, vector<2x4x4x128xbf16>
    %7 = vector.shape_cast %6 : vector<2x4x4x128xbf16> to vector<32x128xbf16>
    %c128 = arith.constant 128 : index
    %c0_9 = arith.constant 0 : index
    %8 = vector.load %arg2[%c128, %c0_9] : memref<1152x128xbf16, #tpu.memory_space<vmem>>, vector<128x128xbf16>
    %cst_10 = arith.constant dense<0.000000e+00> : vector<32x128xf32>
    %9 = tpu.matmul %7, %8, %cst_10 {dimension_numbers = #tpu.dot_dimension_numbers<[1], [0], [0], [1], [0, 0, 1, 1], [], []>} : vector<32x128xbf16>, vector<128x128xbf16>, vector<32x128xf32> -> vector<32x128xf32>
    %10 = arith.addf %5, %9 : vector<32x128xf32>
    %c0_11 = arith.constant 0 : index
    %c0_12 = arith.constant 0 : index
    %c2 = arith.constant 2 : index
    %c0_13 = arith.constant 0 : index
    %11 = vector.load %arg1[%c0_11, %c0_12, %c2, %c0_13] : memref<2x6x6x128xbf16, #tpu.memory_space<vmem>>, vector<2x4x4x128xbf16>
    %12 = vector.shape_cast %11 : vector<2x4x4x128xbf16> to vector<32x128xbf16>
    %c256 = arith.constant 256 : index
    %c0_14 = arith.constant 0 : index
    %13 = vector.load %arg2[%c256, %c0_14] : memref<1152x128xbf16, #tpu.memory_space<vmem>>, vector<128x128xbf16>
    %cst_15 = arith.constant dense<0.000000e+00> : vector<32x128xf32>
    %14 = tpu.matmul %12, %13, %cst_15 {dimension_numbers = #tpu.dot_dimension_numbers<[1], [0], [0], [1], [0, 0, 1, 1], [], []>} : vector<32x128xbf16>, vector<128x128xbf16>, vector<32x128xf32> -> vector<32x128xf32>
    %15 = arith.addf %10, %14 : vector<32x128xf32>
    %c0_16 = arith.constant 0 : index
    %c1_17 = arith.constant 1 : index
    %c0_18 = arith.constant 0 : index
    %c0_19 = arith.constant 0 : index
    %16 = vector.load %arg1[%c0_16, %c1_17, %c0_18, %c0_19] : memref<2x6x6x128xbf16, #tpu.memory_space<vmem>>, vector<2x4x4x128xbf16>
    %17 = vector.shape_cast %16 : vector<2x4x4x128xbf16> to vector<32x128xbf16>
    %c384 = arith.constant 384 : index
    %c0_20 = arith.constant 0 : index
    %18 = vector.load %arg2[%c384, %c0_20] : memref<1152x128xbf16, #tpu.memory_space<vmem>>, vector<128x128xbf16>
    %cst_21 = arith.constant dense<0.000000e+00> : vector<32x128xf32>
    %19 = tpu.matmul %17, %18, %cst_21 {dimension_numbers = #tpu.dot_dimension_numbers<[1], [0], [0], [1], [0, 0, 1, 1], [], []>} : vector<32x128xbf16>, vector<128x128xbf16>, vector<32x128xf32> -> vector<32x128xf32>
    %20 = arith.addf %15, %19 : vector<32x128xf32>
    %c0_22 = arith.constant 0 : index
    %c1_23 = arith.constant 1 : index
    %c1_24 = arith.constant 1 : index
    %c0_25 = arith.constant 0 : index
    %21 = vector.load %arg1[%c0_22, %c1_23, %c1_24, %c0_25] : memref<2x6x6x128xbf16, #tpu.memory_space<vmem>>, vector<2x4x4x128xbf16>
    %22 = vector.shape_cast %21 : vector<2x4x4x128xbf16> to vector<32x128xbf16>
    %c512 = arith.constant 512 : index
    %c0_26 = arith.constant 0 : index
    %23 = vector.load %arg2[%c512, %c0_26] : memref<1152x128xbf16, #tpu.memory_space<vmem>>, vector<128x128xbf16>
    %cst_27 = arith.constant dense<0.000000e+00> : vector<32x128xf32>
    %24 = tpu.matmul %22, %23, %cst_27 {dimension_numbers = #tpu.dot_dimension_numbers<[1], [0], [0], [1], [0, 0, 1, 1], [], []>} : vector<32x128xbf16>, vector<128x128xbf16>, vector<32x128xf32> -> vector<32x128xf32>
    %25 = arith.addf %20, %24 : vector<32x128xf32>
    %c0_28 = arith.constant 0 : index
    %c1_29 = arith.constant 1 : index
    %c2_30 = arith.constant 2 : index
    %c0_31 = arith.constant 0 : index
    %26 = vector.load %arg1[%c0_28, %c1_29, %c2_30, %c0_31] : memref<2x6x6x128xbf16, #tpu.memory_space<vmem>>, vector<2x4x4x128xbf16>
    %27 = vector.shape_cast %26 : vector<2x4x4x128xbf16> to vector<32x128xbf16>
    %c640 = arith.constant 640 : index
    %c0_32 = arith.constant 0 : index
    %28 = vector.load %arg2[%c640, %c0_32] : memref<1152x128xbf16, #tpu.memory_space<vmem>>, vector<128x128xbf16>
    %cst_33 = arith.constant dense<0.000000e+00> : vector<32x128xf32>
    %29 = tpu.matmul %27, %28, %cst_33 {dimension_numbers = #tpu.dot_dimension_numbers<[1], [0], [0], [1], [0, 0, 1, 1], [], []>} : vector<32x128xbf16>, vector<128x128xbf16>, vector<32x128xf32> -> vector<32x128xf32>
    %30 = arith.addf %25, %29 : vector<32x128xf32>
    %c0_34 = arith.constant 0 : index
    %c2_35 = arith.constant 2 : index
    %c0_36 = arith.constant 0 : index
    %c0_37 = arith.constant 0 : index
    %31 = vector.load %arg1[%c0_34, %c2_35, %c0_36, %c0_37] : memref<2x6x6x128xbf16, #tpu.memory_space<vmem>>, vector<2x4x4x128xbf16>
    %32 = vector.shape_cast %31 : vector<2x4x4x128xbf16> to vector<32x128xbf16>
    %c768 = arith.constant 768 : index
    %c0_38 = arith.constant 0 : index
    %33 = vector.load %arg2[%c768, %c0_38] : memref<1152x128xbf16, #tpu.memory_space<vmem>>, vector<128x128xbf16>
    %cst_39 = arith.constant dense<0.000000e+00> : vector<32x128xf32>
    %34 = tpu.matmul %32, %33, %cst_39 {dimension_numbers = #tpu.dot_dimension_numbers<[1], [0], [0], [1], [0, 0, 1, 1], [], []>} : vector<32x128xbf16>, vector<128x128xbf16>, vector<32x128xf32> -> vector<32x128xf32>
    %35 = arith.addf %30, %34 : vector<32x128xf32>
    %c0_40 = arith.constant 0 : index
    %c2_41 = arith.constant 2 : index
    %c1_42 = arith.constant 1 : index
    %c0_43 = arith.constant 0 : index
    %36 = vector.load %arg1[%c0_40, %c2_41, %c1_42, %c0_43] : memref<2x6x6x128xbf16, #tpu.memory_space<vmem>>, vector<2x4x4x128xbf16>
    %37 = vector.shape_cast %36 : vector<2x4x4x128xbf16> to vector<32x128xbf16>
    %c896 = arith.constant 896 : index
    %c0_44 = arith.constant 0 : index
    %38 = vector.load %arg2[%c896, %c0_44] : memref<1152x128xbf16, #tpu.memory_space<vmem>>, vector<128x128xbf16>
    %cst_45 = arith.constant dense<0.000000e+00> : vector<32x128xf32>
    %39 = tpu.matmul %37, %38, %cst_45 {dimension_numbers = #tpu.dot_dimension_numbers<[1], [0], [0], [1], [0, 0, 1, 1], [], []>} : vector<32x128xbf16>, vector<128x128xbf16>, vector<32x128xf32> -> vector<32x128xf32>
    %40 = arith.addf %35, %39 : vector<32x128xf32>
    %c0_46 = arith.constant 0 : index
    %c2_47 = arith.constant 2 : index
    %c2_48 = arith.constant 2 : index
    %c0_49 = arith.constant 0 : index
    %41 = vector.load %arg1[%c0_46, %c2_47, %c2_48, %c0_49] : memref<2x6x6x128xbf16, #tpu.memory_space<vmem>>, vector<2x4x4x128xbf16>
    %42 = vector.shape_cast %41 : vector<2x4x4x128xbf16> to vector<32x128xbf16>
    %c1024 = arith.constant 1024 : index
    %c0_50 = arith.constant 0 : index
    %43 = vector.load %arg2[%c1024, %c0_50] : memref<1152x128xbf16, #tpu.memory_space<vmem>>, vector<128x128xbf16>
    %cst_51 = arith.constant dense<0.000000e+00> : vector<32x128xf32>
    %44 = tpu.matmul %42, %43, %cst_51 {dimension_numbers = #tpu.dot_dimension_numbers<[1], [0], [0], [1], [0, 0, 1, 1], [], []>} : vector<32x128xbf16>, vector<128x128xbf16>, vector<32x128xf32> -> vector<32x128xf32>
    %45 = arith.addf %40, %44 : vector<32x128xf32>
    %46 = vector.shape_cast %45 : vector<32x128xf32> to vector<2x4x4x128xf32>
    %47 = arith.truncf %46 : vector<2x4x4x128xf32> to vector<2x4x4x128xbf16>
    %c0_52 = arith.constant 0 : index
    %c0_53 = arith.constant 0 : index
    %c0_54 = arith.constant 0 : index
    %c0_55 = arith.constant 0 : index
    %48 = vector.load %arg3[%c0_52, %c0_53, %c0_54, %c0_55] : memref<2x4x4x128xbf16, #tpu.memory_space<vmem>>, vector<2x4x4x128xbf16>
    tpu.vector_store %arg3[%c0_52, %c0_53, %c0_54, %c0_55], %47 {strides = array<i32>} : memref<2x4x4x128xbf16, #tpu.memory_space<vmem>>, vector<2x4x4x128xbf16>,
    return
  }
  func.func @transform_0(%arg0: i32) -> (i32, i32, i32, i32) {
    %c0_i32 = arith.constant 0 : i32
    %c0_i32_0 = arith.constant 0 : i32
    %c0_i32_1 = arith.constant 0 : i32
    %c0_i32_2 = arith.constant 0 : i32
    return %arg0, %c0_i32, %c0_i32_0, %c0_i32_1 : i32, i32, i32, i32
  }
  func.func @transform_1(%arg0: i32) -> (i32, i32) {
    %c0_i32 = arith.constant 0 : i32
    %c0_i32_0 = arith.constant 0 : i32
    %c0_i32_1 = arith.constant 0 : i32
    return %c0_i32, %c0_i32_0 : i32, i32
  }
  func.func @transform_2(%arg0: i32) -> (i32, i32, i32, i32) {
    %c0_i32 = arith.constant 0 : i32
    %c0_i32_0 = arith.constant 0 : i32
    %c0_i32_1 = arith.constant 0 : i32
    %c0_i32_2 = arith.constant 0 : i32
    return %arg0, %c0_i32, %c0_i32_0, %c0_i32_1 : i32, i32, i32, i32
  }
}

</mosaic_0001>

<llo_original>
// kernel: tpu_custom_call.1
$region0: #{tpu_custom_call.1}
  #allocation0 [shape = 'u32[]', space=smem, size = 0x4, offset = 0x4, fixed_abs, tag = 'smem constant byte address 0x4 - core index']
  #allocation1 [shape = 'u32[144,128]{1,0:T(1,128)}', space=vmem, size = 0x12000, scoped, tag = 'internal scratch']
  %s0 = inlined_call_operand.vmem [shape: bf16[2,6,6,128], index: 0, kind: input, shape index: {}]
  %s1 = inlined_call_operand.hbm [shape: bf16[1152,128], index: 1, kind: input, shape index: {}]
  %s2 = inlined_call_operand.hbm [shape: bf16[2,4,4,128], index: 2, kind: output, shape index: {}]
  %s3 = sld [smem:[#allocation0]]
  $region22: #{tpu_custom_call.1} parent=0
    _
  %s5 = ssub.s32 1, %s3
  %s6 = scalar_select 0, %s5, %s3
  $region1: #{tpu_custom_call.1} parent=0
    #allocation2 [shape = 'u8[294912]{0}', space=vmem, size = 0x48000, scoped, tag = 'input window, operand 1, single buffered']
    #allocation3 [shape = 's32[1]{0}', space=sflag, size = 0x4, scoped, tag = 'scoped memory for tpu_custom_call.1']
    #allocation4 [shape = 's32[1]{0}', space=sflag, size = 0x4, scoped, tag = 'scoped memory for tpu_custom_call.1']
    #allocation5 [shape = 'u8[8192]{0}', space=vmem, size = 0x2000, scoped, tag = 'output window, operand 0, single buffered']
    %7 = vsyncpa [#allocation3], 0
    %8 = vsyncpa [#allocation4], 0
    // Predicated region
    $region2: #{tpu_custom_call.1} parent=1 // pred_check
      _
    $region3: #{tpu_custom_call.1} parent=1 // pred_check_branch
      %10 = sbr.rel (0) target = $region5
    $region4: #{tpu_custom_call.1} parent=1 // pred_region
      _
    $region5: #{tpu_custom_call.1} parent=1 // pred_fallthru
      _
    // Predicated region
    $region6: #{tpu_custom_call.1} parent=1 // pred_check
      _
    $region7: #{tpu_custom_call.1} parent=1 // pred_check_branch
      %12 = sbr.rel (0) target = $region9
    $region8: #{tpu_custom_call.1} parent=1 // pred_region
      %s14 = ssub.s32 9216, 9216
      %15 = vsyncadd [#allocation3], %s14
      %s16 = sshll.u32 [#allocation2], 4
      %s17 = int_to_ptr.vmem [resolvable:$true] %s16
      %22 = dma.hbm_to_vmem [thread:$0]  %s1, 9216, %s17, [#allocation3], 64, 64, 4
    $region9: #{tpu_custom_call.1} parent=1 // pred_fallthru
      _
    // Predicated region
    $region10: #{tpu_custom_call.1} parent=1 // pred_check
      _
    $region11: #{tpu_custom_call.1} parent=1 // pred_check_branch
      %24 = sbr.rel (0) target = $region13
    $region12: #{tpu_custom_call.1} parent=1 // pred_region
      %25 = dma.done [#allocation3], 9216
    $region13: #{tpu_custom_call.1} parent=1 // pred_fallthru
      _
    %v27 = vld [vmem:[%s0] sm:$0x3]
    %v28 = vld [vmem:[%s0 + $0x4] sm:$0x3]
    %v29 = vld [vmem:[%s0 + $0x8] sm:$0x3]
    %v30 = vld [vmem:[%s0 + $0xc] sm:$0x3]
    %v31 = vld [vmem:[%s0 + $0x18] sm:$0x3]
    %v32 = vld [vmem:[%s0 + $0x1c] sm:$0x3]
    %v33 = vld [vmem:[%s0 + $0x20] sm:$0x3]
    %v34 = vld [vmem:[%s0 + $0x24] sm:$0x3]
    %v35 = vld [vmem:[#allocation2] sm:$0xf]
    %v36 = vld [vmem:[#allocation2 + $0x4] sm:$0xf]
    %v37 = vld [vmem:[#allocation2 + $0x8] sm:$0xf]
    %v38 = vld [vmem:[#allocation2 + $0xc] sm:$0xf]
    %v39 = vld [vmem:[#allocation2 + $0x10] sm:$0xf]
    %v40 = vld [vmem:[#allocation2 + $0x14] sm:$0xf]
    %v41 = vld [vmem:[#allocation2 + $0x18] sm:$0xf]
    %v42 = vld [vmem:[#allocation2 + $0x1c] sm:$0xf]
    %v43 = vld [vmem:[#allocation2 + $0x20] sm:$0xf]
    %v44 = vld [vmem:[#allocation2 + $0x24] sm:$0xf]
    %v45 = vld [vmem:[#allocation2 + $0x28] sm:$0xf]
    %v46 = vld [vmem:[#allocation2 + $0x2c] sm:$0xf]
    %v47 = vld [vmem:[#allocation2 + $0x30] sm:$0xf]
    %v48 = vld [vmem:[#allocation2 + $0x34] sm:$0xf]
    %v49 = vld [vmem:[#allocation2 + $0x38] sm:$0xf]
    %v50 = vld [vmem:[#allocation2 + $0x3c] sm:$0xf]
    %v51 = vld [vmem:[%s0] sm:$0x7]
    %v52 = vld [vmem:[%s0 + $0x4] sm:$0x7]
    %v53 = vld [vmem:[%s0 + $0x8] sm:$0x7]
    %v54 = vld [vmem:[%s0 + $0xc] sm:$0x7]
    %v55 = vld [vmem:[%s0 + $0x18] sm:$0x7]
    %v56 = vld [vmem:[%s0 + $0x1c] sm:$0x7]
    %v57 = vld [vmem:[%s0 + $0x20] sm:$0x7]
    %v58 = vld [vmem:[%s0 + $0x24] sm:$0x7]
    %v68 = vunpack.c.l.s4 1983009808
    %v69 = vunpack.c.0.s8 %v68
    %v70 = vlaneseq
    %v71 = vshrl.u32 %v70, 7
    %v72 = vsub.s32 %v69, %v71
    %v73 = vrot.slane %v51, %v72
    %v74 = vcombine.high %v73, %v73
    %v76 = vunpack.c.l.s4 1983009808
    %v77 = vunpack.c.0.s8 %v76
    %v78 = vlaneseq
    %v79 = vshrl.u32 %v78, 7
    %v80 = vsub.s32 %v77, %v79
    %v81 = vrot.slane %v52, %v80
    %v82 = vcombine.high %v81, %v81
    %v84 = vunpack.c.l.s4 1983009808
    %v85 = vunpack.c.0.s8 %v84
    %v86 = vlaneseq
    %v87 = vshrl.u32 %v86, 7
    %v88 = vsub.s32 %v85, %v87
    %v89 = vrot.slane %v53, %v88
    %v90 = vcombine.high %v89, %v89
    %v92 = vunpack.c.l.s4 1983009808
    %v93 = vunpack.c.0.s8 %v92
    %v94 = vlaneseq
    %v95 = vshrl.u32 %v94, 7
    %v96 = vsub.s32 %v93, %v95
    %v97 = vrot.slane %v54, %v96
    %v98 = vcombine.high %v97, %v97
    %v100 = vunpack.c.l.s4 1983009808
    %v101 = vunpack.c.0.s8 %v100
    %v102 = vlaneseq
    %v103 = vshrl.u32 %v102, 7
    %v104 = vsub.s32 %v101, %v103
    %v105 = vrot.slane %v55, %v104
    %v106 = vcombine.high %v105, %v105
    %v108 = vunpack.c.l.s4 1983009808
    %v109 = vunpack.c.0.s8 %v108
    %v110 = vlaneseq
    %v111 = vshrl.u32 %v110, 7
    %v112 = vsub.s32 %v109, %v111
    %v113 = vrot.slane %v56, %v112
    %v114 = vcombine.high %v113, %v113
    %v116 = vunpack.c.l.s4 1983009808
    %v117 = vunpack.c.0.s8 %v116
    %v118 = vlaneseq
    %v119 = vshrl.u32 %v118, 7
    %v120 = vsub.s32 %v117, %v119
    %v121 = vrot.slane %v57, %v120
    %v122 = vcombine.high %v121, %v121
    %v124 = vunpack.c.l.s4 1983009808
    %v125 = vunpack.c.0.s8 %v124
    %v126 = vlaneseq
    %v127 = vshrl.u32 %v126, 7
    %v128 = vsub.s32 %v125, %v127
    %v129 = vrot.slane %v58, %v128
    %v130 = vcombine.high %v129, %v129
    %vm131 = vsmask.f32 1280
    %vm132 = vsmask.f32 3336
    %vm133 = vmor %vm131, %vm132
    %vm134 = vsmask.f32 5392
    %vm135 = vmor %vm133, %vm134
    %vm136 = vsmask.f32 7448
    %vm137 = vmor %vm135, %vm136
    %v139 = vshrl.u32 %v73, 16
    %v141 = vrot.slane %v139, 6
    %v142 = vshll.u32 %v73, 16
    %v144 = vrot.slane %v142, 7
    %v145 = vor.u32 %v141, %v144
    %v146 = vrot.slane %v145, 2
    %v148 = vshll.u32 %v74, 16
    %v150 = vrot.slane %v148, 7
    %v151 = vsel %vm137, %v146, %v150
    %v153 = vshrl.u32 %v81, 16
    %v155 = vrot.slane %v153, 6
    %v156 = vshll.u32 %v81, 16
    %v158 = vrot.slane %v156, 7
    %v159 = vor.u32 %v155, %v158
    %v160 = vrot.slane %v159, 2
    %v162 = vshll.u32 %v82, 16
    %v164 = vrot.slane %v162, 7
    %v165 = vsel %vm137, %v160, %v164
    %v167 = vshrl.u32 %v89, 16
    %v169 = vrot.slane %v167, 6
    %v170 = vshll.u32 %v89, 16
    %v172 = vrot.slane %v170, 7
    %v173 = vor.u32 %v169, %v172
    %v174 = vrot.slane %v173, 2
    %v176 = vshll.u32 %v90, 16
    %v178 = vrot.slane %v176, 7
    %v179 = vsel %vm137, %v174, %v178
    %v181 = vshrl.u32 %v97, 16
    %v183 = vrot.slane %v181, 6
    %v184 = vshll.u32 %v97, 16
    %v186 = vrot.slane %v184, 7
    %v187 = vor.u32 %v183, %v186
    %v188 = vrot.slane %v187, 2
    %v190 = vshll.u32 %v98, 16
    %v192 = vrot.slane %v190, 7
    %v193 = vsel %vm137, %v188, %v192
    %v195 = vshrl.u32 %v105, 16
    %v197 = vrot.slane %v195, 6
    %v198 = vshll.u32 %v105, 16
    %v200 = vrot.slane %v198, 7
    %v201 = vor.u32 %v197, %v200
    %v202 = vrot.slane %v201, 2
    %v204 = vshll.u32 %v106, 16
    %v206 = vrot.slane %v204, 7
    %v207 = vsel %vm137, %v202, %v206
    %v209 = vshrl.u32 %v113, 16
    %v211 = vrot.slane %v209, 6
    %v212 = vshll.u32 %v113, 16
    %v214 = vrot.slane %v212, 7
    %v215 = vor.u32 %v211, %v214
    %v216 = vrot.slane %v215, 2
    %v218 = vshll.u32 %v114, 16
    %v220 = vrot.slane %v218, 7
    %v221 = vsel %vm137, %v216, %v220
    %v223 = vshrl.u32 %v121, 16
    %v225 = vrot.slane %v223, 6
    %v226 = vshll.u32 %v121, 16
    %v228 = vrot.slane %v226, 7
    %v229 = vor.u32 %v225, %v228
    %v230 = vrot.slane %v229, 2
    %v232 = vshll.u32 %v122, 16
    %v234 = vrot.slane %v232, 7
    %v235 = vsel %vm137, %v230, %v234
    %v237 = vshrl.u32 %v129, 16
    %v239 = vrot.slane %v237, 6
    %v240 = vshll.u32 %v129, 16
    %v242 = vrot.slane %v240, 7
    %v243 = vor.u32 %v239, %v242
    %v244 = vrot.slane %v243, 2
    %v246 = vshll.u32 %v130, 16
    %v248 = vrot.slane %v246, 7
    %v249 = vsel %vm137, %v244, %v248
    %v250 = vld [vmem:[#allocation2 + $0x40] sm:$0xf]
    %v251 = vld [vmem:[#allocation2 + $0x44] sm:$0xf]
    %v252 = vld [vmem:[#allocation2 + $0x48] sm:$0xf]
    %v253 = vld [vmem:[#allocation2 + $0x4c] sm:$0xf]
    %v254 = vld [vmem:[#allocation2 + $0x50] sm:$0xf]
    %v255 = vld [vmem:[#allocation2 + $0x54] sm:$0xf]
    %v256 = vld [vmem:[#allocation2 + $0x58] sm:$0xf]
    %v257 = vld [vmem:[#allocation2 + $0x5c] sm:$0xf]
    %v258 = vld [vmem:[#allocation2 + $0x60] sm:$0xf]
    %v259 = vld [vmem:[#allocation2 + $0x64] sm:$0xf]
    %v260 = vld [vmem:[#allocation2 + $0x68] sm:$0xf]
    %v261 = vld [vmem:[#allocation2 + $0x6c] sm:$0xf]
    %v262 = vld [vmem:[#allocation2 + $0x70] sm:$0xf]
    %v263 = vld [vmem:[#allocation2 + $0x74] sm:$0xf]
    %v264 = vld [vmem:[#allocation2 + $0x78] sm:$0xf]
    %v265 = vld [vmem:[#allocation2 + $0x7c] sm:$0xf]
    %v266 = vcombine.low %v151, %v165
    %v267 = vcombine.low %v179, %v193
    %v269 = vunpack.c.l.s4 1983009808
    %v270 = vunpack.c.0.s8 %v269
    %v271 = vlaneseq
    %v272 = vshrl.u32 %v271, 7
    %v273 = vsub.s32 %v270, %v272
    %v274 = vrot.slane %v266, %v273
    %v276 = vunpack.c.l.s4 1983009808
    %v277 = vunpack.c.0.s8 %v276
    %v278 = vlaneseq
    %v279 = vshrl.u32 %v278, 7
    %v280 = vsub.s32 %v277, %v279
    %v281 = vrot.slane %v267, %v280
    %v282 = vcombine.low %v274, %v281
    %v283 = vcombine.low %v207, %v221
    %v284 = vcombine.low %v235, %v249
    %v286 = vunpack.c.l.s4 1983009808
    %v287 = vunpack.c.0.s8 %v286
    %v288 = vlaneseq
    %v289 = vshrl.u32 %v288, 7
    %v290 = vsub.s32 %v287, %v289
    %v291 = vrot.slane %v283, %v290
    %v293 = vunpack.c.l.s4 1983009808
    %v294 = vunpack.c.0.s8 %v293
    %v295 = vlaneseq
    %v296 = vshrl.u32 %v295, 7
    %v297 = vsub.s32 %v294, %v296
    %v298 = vrot.slane %v284, %v297
    %v299 = vcombine.low %v291, %v298
    %v318 = vunpack.c.l.b16 %v250
    %v319 = vunpack.c.l.b16 %v251
    %v320 = vunpack.c.l.b16 %v252
    %v321 = vunpack.c.l.b16 %v253
    %v322 = vunpack.c.l.b16 %v254
    %v323 = vunpack.c.l.b16 %v255
    %v324 = vunpack.c.l.b16 %v256
    %v325 = vunpack.c.l.b16 %v257
    %v326 = vunpack.c.l.b16 %v258
    %v327 = vunpack.c.l.b16 %v259
    %v328 = vunpack.c.l.b16 %v260
    %v329 = vunpack.c.l.b16 %v261
    %v330 = vunpack.c.l.b16 %v262
    %v331 = vunpack.c.l.b16 %v263
    %v332 = vunpack.c.l.b16 %v264
    %v333 = vunpack.c.l.b16 %v265
    %v334 = vpack.c.b16 %v319, %v318
    %v335 = vpack.c.b16 %v321, %v320
    %v336 = vpack.c.b16 %v323, %v322
    %v337 = vpack.c.b16 %v325, %v324
    %v338 = vpack.c.b16 %v327, %v326
    %v339 = vpack.c.b16 %v329, %v328
    %v340 = vpack.c.b16 %v331, %v330
    %v341 = vpack.c.b16 %v333, %v332
    %350 = vmatprep.subr.bf16.mxu0 0
    %351 = vmatpush1.bf16.msra.mxu0 %v341
    %352 = vmatprep.subr.bf16.mxu0 0
    %353 = vmatpush1.bf16.msra.mxu0 %v340
    %354 = vmatprep.subr.bf16.mxu0 0
    %355 = vmatpush1.bf16.msra.mxu0 %v339
    %356 = vmatprep.subr.bf16.mxu0 0
    %357 = vmatpush1.bf16.msra.mxu0 %v338
    %358 = vmatprep.subr.bf16.mxu0 0
    %359 = vmatpush1.bf16.msra.mxu0 %v337
    %360 = vmatprep.subr.bf16.mxu0 0
    %361 = vmatpush1.bf16.msra.mxu0 %v336
    %362 = vmatprep.subr.bf16.mxu0 0
    %363 = vmatpush1.bf16.msra.mxu0 %v335
    %364 = vmatprep.subr.bf16.mxu0 0
    %365 = vmatpush1.bf16.msra.mxu0 %v334
    %366 = vmatprep.subr.bf16.mxu0 0
    %367 = vmatpush2.bf16.msra.mxu0 0
    %368 = vmatprep.subr.bf16.mxu0 0
    %369 = vmatpush2.bf16.msra.mxu0 0
    %370 = vmatprep.subr.bf16.mxu0 0
    %371 = vmatpush2.bf16.msra.mxu0 0
    %372 = vmatprep.subr.bf16.mxu0 0
    %373 = vmatpush2.bf16.msra.mxu0 0
    %374 = vmatprep.subr.bf16.mxu0 0
    %375 = vmatpush2.bf16.msra.mxu0 0
    %376 = vmatprep.subr.bf16.mxu0 0
    %377 = vmatpush2.bf16.msra.mxu0 0
    %378 = vmatprep.subr.bf16.mxu0 0
    %379 = vmatpush2.bf16.msra.mxu0 0
    %380 = vmatprep.subr.bf16.mxu0 0
    %381 = vmatpush2.bf16.msra.mxu0 0
    %382 = vmatprep.mubr.bf16.mxu0 0
    %383 = vmatmul.mubr.bf16.gmra.mxu0 %v282
    %v384 = vpop.f32.mrf.mxu0
    %v385 = vadd.f32 0.0, %v384
    %v386 = vpop.f32.mrf.mxu0
    %v387 = vpop.f32.mrf.mxu0
    %v388 = vadd.f32 0.0, %v387
    %v389 = vpop.f32.mrf.mxu0
    %390 = vmatprep.mubr.bf16.mxu0 0
    %391 = vmatmul.mubr.bf16.gmra.mxu0 %v299
    %v392 = vpop.f32.mrf.mxu0
    %v393 = vadd.f32 0.0, %v392
    %v394 = vpop.f32.mrf.mxu0
    %v395 = vpop.f32.mrf.mxu0
    %v396 = vadd.f32 0.0, %v395
    %v397 = vpop.f32.mrf.mxu0
    %398 = vdwg.mxu0
    %v407 = vcombine.low %v27, %v28
    %v408 = vcombine.low %v29, %v30
    %v410 = vunpack.c.l.s4 1983009808
    %v411 = vunpack.c.0.s8 %v410
    %v412 = vlaneseq
    %v413 = vshrl.u32 %v412, 7
    %v414 = vsub.s32 %v411, %v413
    %v415 = vrot.slane %v407, %v414
    %v417 = vunpack.c.l.s4 1983009808
    %v418 = vunpack.c.0.s8 %v417
    %v419 = vlaneseq
    %v420 = vshrl.u32 %v419, 7
    %v421 = vsub.s32 %v418, %v420
    %v422 = vrot.slane %v408, %v421
    %v423 = vcombine.low %v415, %v422
    %v424 = vcombine.low %v31, %v32
    %v425 = vcombine.low %v33, %v34
    %v427 = vunpack.c.l.s4 1983009808
    %v428 = vunpack.c.0.s8 %v427
    %v429 = vlaneseq
    %v430 = vshrl.u32 %v429, 7
    %v431 = vsub.s32 %v428, %v430
    %v432 = vrot.slane %v424, %v431
    %v434 = vunpack.c.l.s4 1983009808
    %v435 = vunpack.c.0.s8 %v434
    %v436 = vlaneseq
    %v437 = vshrl.u32 %v436, 7
    %v438 = vsub.s32 %v435, %v437
    %v439 = vrot.slane %v425, %v438
    %v440 = vcombine.low %v432, %v439
    %v459 = vunpack.c.l.b16 %v35
    %v460 = vunpack.c.l.b16 %v36
    %v461 = vunpack.c.l.b16 %v37
    %v462 = vunpack.c.l.b16 %v38
    %v463 = vunpack.c.l.b16 %v39
    %v464 = vunpack.c.l.b16 %v40
    %v465 = vunpack.c.l.b16 %v41
    %v466 = vunpack.c.l.b16 %v42
    %v467 = vunpack.c.l.b16 %v43
    %v468 = vunpack.c.l.b16 %v44
    %v469 = vunpack.c.l.b16 %v45
    %v470 = vunpack.c.l.b16 %v46
    %v471 = vunpack.c.l.b16 %v47
    %v472 = vunpack.c.l.b16 %v48
    %v473 = vunpack.c.l.b16 %v49
    %v474 = vunpack.c.l.b16 %v50
    %v475 = vpack.c.b16 %v460, %v459
    %v476 = vpack.c.b16 %v462, %v461
    %v477 = vpack.c.b16 %v464, %v463
    %v478 = vpack.c.b16 %v466, %v465
    %v479 = vpack.c.b16 %v468, %v467
    %v480 = vpack.c.b16 %v470, %v469
    %v481 = vpack.c.b16 %v472, %v471
    %v482 = vpack.c.b16 %v474, %v473
    %491 = vmatprep.subr.bf16.mxu0 0
    %492 = vmatpush1.bf16.msra.mxu0 %v482
    %493 = vmatprep.subr.bf16.mxu0 0
    %494 = vmatpush1.bf16.msra.mxu0 %v481
    %495 = vmatprep.subr.bf16.mxu0 0
    %496 = vmatpush1.bf16.msra.mxu0 %v480
    %497 = vmatprep.subr.bf16.mxu0 0
    %498 = vmatpush1.bf16.msra.mxu0 %v479
    %499 = vmatprep.subr.bf16.mxu0 0
    %500 = vmatpush1.bf16.msra.mxu0 %v478
    %501 = vmatprep.subr.bf16.mxu0 0
    %502 = vmatpush1.bf16.msra.mxu0 %v477
    %503 = vmatprep.subr.bf16.mxu0 0
    %504 = vmatpush1.bf16.msra.mxu0 %v476
    %505 = vmatprep.subr.bf16.mxu0 0
    %506 = vmatpush1.bf16.msra.mxu0 %v475
    %507 = vmatprep.subr.bf16.mxu0 0
    %508 = vmatpush2.bf16.msra.mxu0 0
    %509 = vmatprep.subr.bf16.mxu0 0
    %510 = vmatpush2.bf16.msra.mxu0 0
    %511 = vmatprep.subr.bf16.mxu0 0
    %512 = vmatpush2.bf16.msra.mxu0 0
    %513 = vmatprep.subr.bf16.mxu0 0
    %514 = vmatpush2.bf16.msra.mxu0 0
    %515 = vmatprep.subr.bf16.mxu0 0
    %516 = vmatpush2.bf16.msra.mxu0 0
    %517 = vmatprep.subr.bf16.mxu0 0
    %518 = vmatpush2.bf16.msra.mxu0 0
    %519 = vmatprep.subr.bf16.mxu0 0
    %520 = vmatpush2.bf16.msra.mxu0 0
    %521 = vmatprep.subr.bf16.mxu0 0
    %522 = vmatpush2.bf16.msra.mxu0 0
    %523 = vmatprep.mubr.bf16.mxu0 0
    %524 = vmatmul.mubr.bf16.gmra.mxu0 %v423
    %v525 = vpop.f32.mrf.mxu0
    %v526 = vadd.f32 %v385, %v525
    %v527 = vpop.f32.mrf.mxu0
    %v528 = vpop.f32.mrf.mxu0
    %v529 = vadd.f32 %v388, %v528
    %v530 = vpop.f32.mrf.mxu0
    %531 = vmatprep.mubr.bf16.mxu0 0
    %532 = vmatmul.mubr.bf16.gmra.mxu0 %v440
    %v533 = vpop.f32.mrf.mxu0
    %v534 = vadd.f32 %v393, %v533
    %v535 = vpop.f32.mrf.mxu0
    %v536 = vpop.f32.mrf.mxu0
    %v537 = vadd.f32 %v396, %v536
    %v538 = vpop.f32.mrf.mxu0
    %539 = vdwg.mxu0
    %v540 = vld [vmem:[%s0] sm:$0x6]
    %v541 = vld [vmem:[%s0 + $0x4] sm:$0x6]
    %v542 = vld [vmem:[%s0 + $0x8] sm:$0x6]
    %v543 = vld [vmem:[%s0 + $0xc] sm:$0x6]
    %v544 = vld [vmem:[%s0 + $0x18] sm:$0x6]
    %v545 = vld [vmem:[%s0 + $0x1c] sm:$0x6]
    %v546 = vld [vmem:[%s0 + $0x20] sm:$0x6]
    %v547 = vld [vmem:[%s0 + $0x24] sm:$0x6]
    %v557 = vunpack.c.l.s4 1983009808
    %v558 = vunpack.c.0.s8 %v557
    %v559 = vlaneseq
    %v560 = vshrl.u32 %v559, 7
    %v561 = vsub.s32 %v558, %v560
    %v562 = vrot.slane %v540, %v561
    %v563 = vcombine.high %v562, %v562
    %v565 = vunpack.c.l.s4 1983009808
    %v566 = vunpack.c.0.s8 %v565
    %v567 = vlaneseq
    %v568 = vshrl.u32 %v567, 7
    %v569 = vsub.s32 %v566, %v568
    %v570 = vrot.slane %v541, %v569
    %v571 = vcombine.high %v570, %v570
    %v573 = vunpack.c.l.s4 1983009808
    %v574 = vunpack.c.0.s8 %v573
    %v575 = vlaneseq
    %v576 = vshrl.u32 %v575, 7
    %v577 = vsub.s32 %v574, %v576
    %v578 = vrot.slane %v542, %v577
    %v579 = vcombine.high %v578, %v578
    %v581 = vunpack.c.l.s4 1983009808
    %v582 = vunpack.c.0.s8 %v581
    %v583 = vlaneseq
    %v584 = vshrl.u32 %v583, 7
    %v585 = vsub.s32 %v582, %v584
    %v586 = vrot.slane %v543, %v585
    %v587 = vcombine.high %v586, %v586
    %v589 = vunpack.c.l.s4 1983009808
    %v590 = vunpack.c.0.s8 %v589
    %v591 = vlaneseq
    %v592 = vshrl.u32 %v591, 7
    %v593 = vsub.s32 %v590, %v592
    %v594 = vrot.slane %v544, %v593
    %v595 = vcombine.high %v594, %v594
    %v597 = vunpack.c.l.s4 1983009808
    %v598 = vunpack.c.0.s8 %v597
    %v599 = vlaneseq
    %v600 = vshrl.u32 %v599, 7
    %v601 = vsub.s32 %v598, %v600
    %v602 = vrot.slane %v545, %v601
    %v603 = vcombine.high %v602, %v602
    %v605 = vunpack.c.l.s4 1983009808
    %v606 = vunpack.c.0.s8 %v605
    %v607 = vlaneseq
    %v608 = vshrl.u32 %v607, 7
    %v609 = vsub.s32 %v606, %v608
    %v610 = vrot.slane %v546, %v609
    %v611 = vcombine.high %v610, %v610
    %v613 = vunpack.c.l.s4 1983009808
    %v614 = vunpack.c.0.s8 %v613
    %v615 = vlaneseq
    %v616 = vshrl.u32 %v615, 7
    %v617 = vsub.s32 %v614, %v616
    %v618 = vrot.slane %v547, %v617
    %v619 = vcombine.high %v618, %v618
    %vm620 = vcmask 1040384
    %vm621 = vcmask 1042434
    %vm622 = vmor %vm620, %vm621
    %vm623 = vcmask 1044484
    %vm624 = vmor %vm622, %vm623
    %vm625 = vcmask 1046534
    %vm626 = vmor %vm624, %vm625
    %v627 = vrot.slane %v562, 7
    %v628 = vrot.slane %v627, 2
    %v629 = vrot.slane %v563, 7
    %v630 = vsel %vm626, %v628, %v629
    %v631 = vrot.slane %v570, 7
    %v632 = vrot.slane %v631, 2
    %v633 = vrot.slane %v571, 7
    %v634 = vsel %vm626, %v632, %v633
    %v635 = vrot.slane %v578, 7
    %v636 = vrot.slane %v635, 2
    %v637 = vrot.slane %v579, 7
    %v638 = vsel %vm626, %v636, %v637
    %v639 = vrot.slane %v586, 7
    %v640 = vrot.slane %v639, 2
    %v641 = vrot.slane %v587, 7
    %v642 = vsel %vm626, %v640, %v641
    %v643 = vrot.slane %v594, 7
    %v644 = vrot.slane %v643, 2
    %v645 = vrot.slane %v595, 7
    %v646 = vsel %vm626, %v644, %v645
    %v647 = vrot.slane %v602, 7
    %v648 = vrot.slane %v647, 2
    %v649 = vrot.slane %v603, 7
    %v650 = vsel %vm626, %v648, %v649
    %v651 = vrot.slane %v610, 7
    %v652 = vrot.slane %v651, 2
    %v653 = vrot.slane %v611, 7
    %v654 = vsel %vm626, %v652, %v653
    %v655 = vrot.slane %v618, 7
    %v656 = vrot.slane %v655, 2
    %v657 = vrot.slane %v619, 7
    %v658 = vsel %vm626, %v656, %v657
    %v659 = vld [vmem:[#allocation2 + $0x80] sm:$0xf]
    %v660 = vld [vmem:[#allocation2 + $0x84] sm:$0xf]
    %v661 = vld [vmem:[#allocation2 + $0x88] sm:$0xf]
    %v662 = vld [vmem:[#allocation2 + $0x8c] sm:$0xf]
    %v663 = vld [vmem:[#allocation2 + $0x90] sm:$0xf]
    %v664 = vld [vmem:[#allocation2 + $0x94] sm:$0xf]
    %v665 = vld [vmem:[#allocation2 + $0x98] sm:$0xf]
    %v666 = vld [vmem:[#allocation2 + $0x9c] sm:$0xf]
    %v667 = vld [vmem:[#allocation2 + $0xa0] sm:$0xf]
    %v668 = vld [vmem:[#allocation2 + $0xa4] sm:$0xf]
    %v669 = vld [vmem:[#allocation2 + $0xa8] sm:$0xf]
    %v670 = vld [vmem:[#allocation2 + $0xac] sm:$0xf]
    %v671 = vld [vmem:[#allocation2 + $0xb0] sm:$0xf]
    %v672 = vld [vmem:[#allocation2 + $0xb4] sm:$0xf]
    %v673 = vld [vmem:[#allocation2 + $0xb8] sm:$0xf]
    %v674 = vld [vmem:[#allocation2 + $0xbc] sm:$0xf]
    %v675 = vcombine.low %v630, %v634
    %v676 = vcombine.low %v638, %v642
    %v678 = vunpack.c.l.s4 1983009808
    %v679 = vunpack.c.0.s8 %v678
    %v680 = vlaneseq
    %v681 = vshrl.u32 %v680, 7
    %v682 = vsub.s32 %v679, %v681
    %v683 = vrot.slane %v675, %v682
    %v685 = vunpack.c.l.s4 1983009808
    %v686 = vunpack.c.0.s8 %v685
    %v687 = vlaneseq
    %v688 = vshrl.u32 %v687, 7
    %v689 = vsub.s32 %v686, %v688
    %v690 = vrot.slane %v676, %v689
    %v691 = vcombine.low %v683, %v690
    %v692 = vcombine.low %v646, %v650
    %v693 = vcombine.low %v654, %v658
    %v695 = vunpack.c.l.s4 1983009808
    %v696 = vunpack.c.0.s8 %v695
    %v697 = vlaneseq
    %v698 = vshrl.u32 %v697, 7
    %v699 = vsub.s32 %v696, %v698
    %v700 = vrot.slane %v692, %v699
    %v702 = vunpack.c.l.s4 1983009808
    %v703 = vunpack.c.0.s8 %v702
    %v704 = vlaneseq
    %v705 = vshrl.u32 %v704, 7
    %v706 = vsub.s32 %v703, %v705
    %v707 = vrot.slane %v693, %v706
    %v708 = vcombine.low %v700, %v707
    %v727 = vunpack.c.l.b16 %v659
    %v728 = vunpack.c.l.b16 %v660
    %v729 = vunpack.c.l.b16 %v661
    %v730 = vunpack.c.l.b16 %v662
    %v731 = vunpack.c.l.b16 %v663
    %v732 = vunpack.c.l.b16 %v664
    %v733 = vunpack.c.l.b16 %v665
    %v734 = vunpack.c.l.b16 %v666
    %v735 = vunpack.c.l.b16 %v667
    %v736 = vunpack.c.l.b16 %v668
    %v737 = vunpack.c.l.b16 %v669
    %v738 = vunpack.c.l.b16 %v670
    %v739 = vunpack.c.l.b16 %v671
    %v740 = vunpack.c.l.b16 %v672
    %v741 = vunpack.c.l.b16 %v673
    %v742 = vunpack.c.l.b16 %v674
    %v743 = vpack.c.b16 %v728, %v727
    %v744 = vpack.c.b16 %v730, %v729
    %v745 = vpack.c.b16 %v732, %v731
    %v746 = vpack.c.b16 %v734, %v733
    %v747 = vpack.c.b16 %v736, %v735
    %v748 = vpack.c.b16 %v738, %v737
    %v749 = vpack.c.b16 %v740, %v739
    %v750 = vpack.c.b16 %v742, %v741
    %759 = vmatprep.subr.bf16.mxu0 0
    %760 = vmatpush1.bf16.msra.mxu0 %v750
    %761 = vmatprep.subr.bf16.mxu0 0
    %762 = vmatpush1.bf16.msra.mxu0 %v749
    %763 = vmatprep.subr.bf16.mxu0 0
    %764 = vmatpush1.bf16.msra.mxu0 %v748
    %765 = vmatprep.subr.bf16.mxu0 0
    %766 = vmatpush1.bf16.msra.mxu0 %v747
    %767 = vmatprep.subr.bf16.mxu0 0
    %768 = vmatpush1.bf16.msra.mxu0 %v746
    %769 = vmatprep.subr.bf16.mxu0 0
    %770 = vmatpush1.bf16.msra.mxu0 %v745
    %771 = vmatprep.subr.bf16.mxu0 0
    %772 = vmatpush1.bf16.msra.mxu0 %v744
    %773 = vmatprep.subr.bf16.mxu0 0
    %774 = vmatpush1.bf16.msra.mxu0 %v743
    %775 = vmatprep.subr.bf16.mxu0 0
    %776 = vmatpush2.bf16.msra.mxu0 0
    %777 = vmatprep.subr.bf16.mxu0 0
    %778 = vmatpush2.bf16.msra.mxu0 0
    %779 = vmatprep.subr.bf16.mxu0 0
    %780 = vmatpush2.bf16.msra.mxu0 0
    %781 = vmatprep.subr.bf16.mxu0 0
    %782 = vmatpush2.bf16.msra.mxu0 0
    %783 = vmatprep.subr.bf16.mxu0 0
    %784 = vmatpush2.bf16.msra.mxu0 0
    %785 = vmatprep.subr.bf16.mxu0 0
    %786 = vmatpush2.bf16.msra.mxu0 0
    %787 = vmatprep.subr.bf16.mxu0 0
    %788 = vmatpush2.bf16.msra.mxu0 0
    %789 = vmatprep.subr.bf16.mxu0 0
    %790 = vmatpush2.bf16.msra.mxu0 0
    %791 = vmatprep.mubr.bf16.mxu0 0
    %792 = vmatmul.mubr.bf16.gmra.mxu0 %v691
    %v793 = vpop.f32.mrf.mxu0
    %v794 = vadd.f32 0.0, %v793
    %v795 = vpop.f32.mrf.mxu0
    %v796 = vpop.f32.mrf.mxu0
    %v797 = vadd.f32 0.0, %v796
    %v798 = vpop.f32.mrf.mxu0
    %799 = vmatprep.mubr.bf16.mxu0 0
    %800 = vmatmul.mubr.bf16.gmra.mxu0 %v708
    %v801 = vpop.f32.mrf.mxu0
    %v802 = vadd.f32 0.0, %v801
    %v803 = vpop.f32.mrf.mxu0
    %v804 = vpop.f32.mrf.mxu0
    %v805 = vadd.f32 0.0, %v804
    %v806 = vpop.f32.mrf.mxu0
    %807 = vdwg.mxu0
    %v808 = vadd.f32 %v526, %v794
    %v809 = vadd.f32 %v529, %v797
    %v810 = vadd.f32 %v534, %v802
    %v811 = vadd.f32 %v537, %v805
    %s812 = scalar_lea.vmem %s0, 4
    %v813 = vld [vmem:[%s812] sm:$0x3]
    %v814 = vld [vmem:[%s812 + $0x4] sm:$0x3]
    %v815 = vld [vmem:[%s812 + $0x8] sm:$0x3]
    %v816 = vld [vmem:[%s812 + $0xc] sm:$0x3]
    %v817 = vld [vmem:[%s812 + $0x18] sm:$0x3]
    %v818 = vld [vmem:[%s812 + $0x1c] sm:$0x3]
    %v819 = vld [vmem:[%s812 + $0x20] sm:$0x3]
    %v820 = vld [vmem:[%s812 + $0x24] sm:$0x3]
    %v821 = vld [vmem:[#allocation2 + $0xc0] sm:$0xf]
    %v822 = vld [vmem:[#allocation2 + $0xc4] sm:$0xf]
    %v823 = vld [vmem:[#allocation2 + $0xc8] sm:$0xf]
    %v824 = vld [vmem:[#allocation2 + $0xcc] sm:$0xf]
    %v825 = vld [vmem:[#allocation2 + $0xd0] sm:$0xf]
    %v826 = vld [vmem:[#allocation2 + $0xd4] sm:$0xf]
    %v827 = vld [vmem:[#allocation2 + $0xd8] sm:$0xf]
    %v828 = vld [vmem:[#allocation2 + $0xdc] sm:$0xf]
    %v829 = vld [vmem:[#allocation2 + $0xe0] sm:$0xf]
    %v830 = vld [vmem:[#allocation2 + $0xe4] sm:$0xf]
    %v831 = vld [vmem:[#allocation2 + $0xe8] sm:$0xf]
    %v832 = vld [vmem:[#allocation2 + $0xec] sm:$0xf]
    %v833 = vld [vmem:[#allocation2 + $0xf0] sm:$0xf]
    %v834 = vld [vmem:[#allocation2 + $0xf4] sm:$0xf]
    %v835 = vld [vmem:[#allocation2 + $0xf8] sm:$0xf]
    %v836 = vld [vmem:[#allocation2 + $0xfc] sm:$0xf]
    %v845 = vcombine.low %v813, %v814
    %v846 = vcombine.low %v815, %v816
    %v848 = vunpack.c.l.s4 1983009808
    %v849 = vunpack.c.0.s8 %v848
    %v850 = vlaneseq
    %v851 = vshrl.u32 %v850, 7
    %v852 = vsub.s32 %v849, %v851
    %v853 = vrot.slane %v845, %v852
    %v855 = vunpack.c.l.s4 1983009808
    %v856 = vunpack.c.0.s8 %v855
    %v857 = vlaneseq
    %v858 = vshrl.u32 %v857, 7
    %v859 = vsub.s32 %v856, %v858
    %v860 = vrot.slane %v846, %v859
    %v861 = vcombine.low %v853, %v860
    %v862 = vcombine.low %v817, %v818
    %v863 = vcombine.low %v819, %v820
    %v865 = vunpack.c.l.s4 1983009808
    %v866 = vunpack.c.0.s8 %v865
    %v867 = vlaneseq
    %v868 = vshrl.u32 %v867, 7
    %v869 = vsub.s32 %v866, %v868
    %v870 = vrot.slane %v862, %v869
    %v872 = vunpack.c.l.s4 1983009808
    %v873 = vunpack.c.0.s8 %v872
    %v874 = vlaneseq
    %v875 = vshrl.u32 %v874, 7
    %v876 = vsub.s32 %v873, %v875
    %v877 = vrot.slane %v863, %v876
    %v878 = vcombine.low %v870, %v877
    %v897 = vunpack.c.l.b16 %v821
    %v898 = vunpack.c.l.b16 %v822
    %v899 = vunpack.c.l.b16 %v823
    %v900 = vunpack.c.l.b16 %v824
    %v901 = vunpack.c.l.b16 %v825
    %v902 = vunpack.c.l.b16 %v826
    %v903 = vunpack.c.l.b16 %v827
    %v904 = vunpack.c.l.b16 %v828
    %v905 = vunpack.c.l.b16 %v829
    %v906 = vunpack.c.l.b16 %v830
    %v907 = vunpack.c.l.b16 %v831
    %v908 = vunpack.c.l.b16 %v832
    %v909 = vunpack.c.l.b16 %v833
    %v910 = vunpack.c.l.b16 %v834
    %v911 = vunpack.c.l.b16 %v835
    %v912 = vunpack.c.l.b16 %v836
    %v913 = vpack.c.b16 %v898, %v897
    %v914 = vpack.c.b16 %v900, %v899
    %v915 = vpack.c.b16 %v902, %v901
    %v916 = vpack.c.b16 %v904, %v903
    %v917 = vpack.c.b16 %v906, %v905
    %v918 = vpack.c.b16 %v908, %v907
    %v919 = vpack.c.b16 %v910, %v909
    %v920 = vpack.c.b16 %v912, %v911
    %929 = vmatprep.subr.bf16.mxu0 0
    %930 = vmatpush1.bf16.msra.mxu0 %v920
    %931 = vmatprep.subr.bf16.mxu0 0
    %932 = vmatpush1.bf16.msra.mxu0 %v919
    %933 = vmatprep.subr.bf16.mxu0 0
    %934 = vmatpush1.bf16.msra.mxu0 %v918
    %935 = vmatprep.subr.bf16.mxu0 0
    %936 = vmatpush1.bf16.msra.mxu0 %v917
    %937 = vmatprep.subr.bf16.mxu0 0
    %938 = vmatpush1.bf16.msra.mxu0 %v916
    %939 = vmatprep.subr.bf16.mxu0 0
    %940 = vmatpush1.bf16.msra.mxu0 %v915
    %941 = vmatprep.subr.bf16.mxu0 0
    %942 = vmatpush1.bf16.msra.mxu0 %v914
    %943 = vmatprep.subr.bf16.mxu0 0
    %944 = vmatpush1.bf16.msra.mxu0 %v913
    %945 = vmatprep.subr.bf16.mxu0 0
    %946 = vmatpush2.bf16.msra.mxu0 0
    %947 = vmatprep.subr.bf16.mxu0 0
    %948 = vmatpush2.bf16.msra.mxu0 0
    %949 = vmatprep.subr.bf16.mxu0 0
    %950 = vmatpush2.bf16.msra.mxu0 0
    %951 = vmatprep.subr.bf16.mxu0 0
    %952 = vmatpush2.bf16.msra.mxu0 0
    %953 = vmatprep.subr.bf16.mxu0 0
    %954 = vmatpush2.bf16.msra.mxu0 0
    %955 = vmatprep.subr.bf16.mxu0 0
    %956 = vmatpush2.bf16.msra.mxu0 0
    %957 = vmatprep.subr.bf16.mxu0 0
    %958 = vmatpush2.bf16.msra.mxu0 0
    %959 = vmatprep.subr.bf16.mxu0 0
    %960 = vmatpush2.bf16.msra.mxu0 0
    %961 = vmatprep.mubr.bf16.mxu0 0
    %962 = vmatmul.mubr.bf16.gmra.mxu0 %v861
    %v963 = vpop.f32.mrf.mxu0
    %v964 = vadd.f32 0.0, %v963
    %v965 = vpop.f32.mrf.mxu0
    %v966 = vpop.f32.mrf.mxu0
    %v967 = vadd.f32 0.0, %v966
    %v968 = vpop.f32.mrf.mxu0
    %969 = vmatprep.mubr.bf16.mxu0 0
    %970 = vmatmul.mubr.bf16.gmra.mxu0 %v878
    %v971 = vpop.f32.mrf.mxu0
    %v972 = vadd.f32 0.0, %v971
    %v973 = vpop.f32.mrf.mxu0
    %v974 = vpop.f32.mrf.mxu0
    %v975 = vadd.f32 0.0, %v974
    %v976 = vpop.f32.mrf.mxu0
    %977 = vdwg.mxu0
    %v978 = vadd.f32 %v808, %v964
    %v979 = vadd.f32 %v809, %v967
    %v980 = vadd.f32 %v810, %v972
    %v981 = vadd.f32 %v811, %v975
    %v982 = vld [vmem:[%s812] sm:$0x7]
    %v983 = vld [vmem:[%s812 + $0x4] sm:$0x7]
    %v984 = vld [vmem:[%s812 + $0x8] sm:$0x7]
    %v985 = vld [vmem:[%s812 + $0xc] sm:$0x7]
    %v986 = vld [vmem:[%s812 + $0x18] sm:$0x7]
    %v987 = vld [vmem:[%s812 + $0x1c] sm:$0x7]
    %v988 = vld [vmem:[%s812 + $0x20] sm:$0x7]
    %v989 = vld [vmem:[%s812 + $0x24] sm:$0x7]
    %v999 = vunpack.c.l.s4 1983009808
    %v1000 = vunpack.c.0.s8 %v999
    %v1001 = vlaneseq
    %v1002 = vshrl.u32 %v1001, 7
    %v1003 = vsub.s32 %v1000, %v1002
    %v1004 = vrot.slane %v982, %v1003
    %v1005 = vcombine.high %v1004, %v1004
    %v1007 = vunpack.c.l.s4 1983009808
    %v1008 = vunpack.c.0.s8 %v1007
    %v1009 = vlaneseq
    %v1010 = vshrl.u32 %v1009, 7
    %v1011 = vsub.s32 %v1008, %v1010
    %v1012 = vrot.slane %v983, %v1011
    %v1013 = vcombine.high %v1012, %v1012
    %v1015 = vunpack.c.l.s4 1983009808
    %v1016 = vunpack.c.0.s8 %v1015
    %v1017 = vlaneseq
    %v1018 = vshrl.u32 %v1017, 7
    %v1019 = vsub.s32 %v1016, %v1018
    %v1020 = vrot.slane %v984, %v1019
    %v1021 = vcombine.high %v1020, %v1020
    %v1023 = vunpack.c.l.s4 1983009808
    %v1024 = vunpack.c.0.s8 %v1023
    %v1025 = vlaneseq
    %v1026 = vshrl.u32 %v1025, 7
    %v1027 = vsub.s32 %v1024, %v1026
    %v1028 = vrot.slane %v985, %v1027
    %v1029 = vcombine.high %v1028, %v1028
    %v1031 = vunpack.c.l.s4 1983009808
    %v1032 = vunpack.c.0.s8 %v1031
    %v1033 = vlaneseq
    %v1034 = vshrl.u32 %v1033, 7
    %v1035 = vsub.s32 %v1032, %v1034
    %v1036 = vrot.slane %v986, %v1035
    %v1037 = vcombine.high %v1036, %v1036
    %v1039 = vunpack.c.l.s4 1983009808
    %v1040 = vunpack.c.0.s8 %v1039
    %v1041 = vlaneseq
    %v1042 = vshrl.u32 %v1041, 7
    %v1043 = vsub.s32 %v1040, %v1042
    %v1044 = vrot.slane %v987, %v1043
    %v1045 = vcombine.high %v1044, %v1044
    %v1047 = vunpack.c.l.s4 1983009808
    %v1048 = vunpack.c.0.s8 %v1047
    %v1049 = vlaneseq
    %v1050 = vshrl.u32 %v1049, 7
    %v1051 = vsub.s32 %v1048, %v1050
    %v1052 = vrot.slane %v988, %v1051
    %v1053 = vcombine.high %v1052, %v1052
    %v1055 = vunpack.c.l.s4 1983009808
    %v1056 = vunpack.c.0.s8 %v1055
    %v1057 = vlaneseq
    %v1058 = vshrl.u32 %v1057, 7
    %v1059 = vsub.s32 %v1056, %v1058
    %v1060 = vrot.slane %v989, %v1059
    %v1061 = vcombine.high %v1060, %v1060
    %v1063 = vshrl.u32 %v1004, 16
    %v1065 = vrot.slane %v1063, 6
    %v1066 = vshll.u32 %v1004, 16
    %v1068 = vrot.slane %v1066, 7
    %v1069 = vor.u32 %v1065, %v1068
    %v1070 = vrot.slane %v1069, 2
    %v1072 = vshll.u32 %v1005, 16
    %v1074 = vrot.slane %v1072, 7
    %v1075 = vsel %vm137, %v1070, %v1074
    %v1077 = vshrl.u32 %v1012, 16
    %v1079 = vrot.slane %v1077, 6
    %v1080 = vshll.u32 %v1012, 16
    %v1082 = vrot.slane %v1080, 7
    %v1083 = vor.u32 %v1079, %v1082
    %v1084 = vrot.slane %v1083, 2
    %v1086 = vshll.u32 %v1013, 16
    %v1088 = vrot.slane %v1086, 7
    %v1089 = vsel %vm137, %v1084, %v1088
    %v1091 = vshrl.u32 %v1020, 16
    %v1093 = vrot.slane %v1091, 6
    %v1094 = vshll.u32 %v1020, 16
    %v1096 = vrot.slane %v1094, 7
    %v1097 = vor.u32 %v1093, %v1096
    %v1098 = vrot.slane %v1097, 2
    %v1100 = vshll.u32 %v1021, 16
    %v1102 = vrot.slane %v1100, 7
    %v1103 = vsel %vm137, %v1098, %v1102
    %v1105 = vshrl.u32 %v1028, 16
    %v1107 = vrot.slane %v1105, 6
    %v1108 = vshll.u32 %v1028, 16
    %v1110 = vrot.slane %v1108, 7
    %v1111 = vor.u32 %v1107, %v1110
    %v1112 = vrot.slane %v1111, 2
    %v1114 = vshll.u32 %v1029, 16
    %v1116 = vrot.slane %v1114, 7
    %v1117 = vsel %vm137, %v1112, %v1116
    %v1119 = vshrl.u32 %v1036, 16
    %v1121 = vrot.slane %v1119, 6
    %v1122 = vshll.u32 %v1036, 16
    %v1124 = vrot.slane %v1122, 7
    %v1125 = vor.u32 %v1121, %v1124
    %v1126 = vrot.slane %v1125, 2
    %v1128 = vshll.u32 %v1037, 16
    %v1130 = vrot.slane %v1128, 7
    %v1131 = vsel %vm137, %v1126, %v1130
    %v1133 = vshrl.u32 %v1044, 16
    %v1135 = vrot.slane %v1133, 6
    %v1136 = vshll.u32 %v1044, 16
    %v1138 = vrot.slane %v1136, 7
    %v1139 = vor.u32 %v1135, %v1138
    %v1140 = vrot.slane %v1139, 2
    %v1142 = vshll.u32 %v1045, 16
    %v1144 = vrot.slane %v1142, 7
    %v1145 = vsel %vm137, %v1140, %v1144
    %v1147 = vshrl.u32 %v1052, 16
    %v1149 = vrot.slane %v1147, 6
    %v1150 = vshll.u32 %v1052, 16
    %v1152 = vrot.slane %v1150, 7
    %v1153 = vor.u32 %v1149, %v1152
    %v1154 = vrot.slane %v1153, 2
    %v1156 = vshll.u32 %v1053, 16
    %v1158 = vrot.slane %v1156, 7
    %v1159 = vsel %vm137, %v1154, %v1158
    %v1161 = vshrl.u32 %v1060, 16
    %v1163 = vrot.slane %v1161, 6
    %v1164 = vshll.u32 %v1060, 16
    %v1166 = vrot.slane %v1164, 7
    %v1167 = vor.u32 %v1163, %v1166
    %v1168 = vrot.slane %v1167, 2
    %v1170 = vshll.u32 %v1061, 16
    %v1172 = vrot.slane %v1170, 7
    %v1173 = vsel %vm137, %v1168, %v1172
    %v1174 = vld [vmem:[#allocation2 + $0x100] sm:$0xf]
    %v1175 = vld [vmem:[#allocation2 + $0x104] sm:$0xf]
    %v1176 = vld [vmem:[#allocation2 + $0x108] sm:$0xf]
    %v1177 = vld [vmem:[#allocation2 + $0x10c] sm:$0xf]
    %v1178 = vld [vmem:[#allocation2 + $0x110] sm:$0xf]
    %v1179 = vld [vmem:[#allocation2 + $0x114] sm:$0xf]
    %v1180 = vld [vmem:[#allocation2 + $0x118] sm:$0xf]
    %v1181 = vld [vmem:[#allocation2 + $0x11c] sm:$0xf]
    %v1182 = vld [vmem:[#allocation2 + $0x120] sm:$0xf]
    %v1183 = vld [vmem:[#allocation2 + $0x124] sm:$0xf]
    %v1184 = vld [vmem:[#allocation2 + $0x128] sm:$0xf]
    %v1185 = vld [vmem:[#allocation2 + $0x12c] sm:$0xf]
    %v1186 = vld [vmem:[#allocation2 + $0x130] sm:$0xf]
    %v1187 = vld [vmem:[#allocation2 + $0x134] sm:$0xf]
    %v1188 = vld [vmem:[#allocation2 + $0x138] sm:$0xf]
    %v1189 = vld [vmem:[#allocation2 + $0x13c] sm:$0xf]
    %v1190 = vcombine.low %v1075, %v1089
    %v1191 = vcombine.low %v1103, %v1117
    %v1193 = vunpack.c.l.s4 1983009808
    %v1194 = vunpack.c.0.s8 %v1193
    %v1195 = vlaneseq
    %v1196 = vshrl.u32 %v1195, 7
    %v1197 = vsub.s32 %v1194, %v1196
    %v1198 = vrot.slane %v1190, %v1197
    %v1200 = vunpack.c.l.s4 1983009808
    %v1201 = vunpack.c.0.s8 %v1200
    %v1202 = vlaneseq
    %v1203 = vshrl.u32 %v1202, 7
    %v1204 = vsub.s32 %v1201, %v1203
    %v1205 = vrot.slane %v1191, %v1204
    %v1206 = vcombine.low %v1198, %v1205
    %v1207 = vcombine.low %v1131, %v1145
    %v1208 = vcombine.low %v1159, %v1173
    %v1210 = vunpack.c.l.s4 1983009808
    %v1211 = vunpack.c.0.s8 %v1210
    %v1212 = vlaneseq
    %v1213 = vshrl.u32 %v1212, 7
    %v1214 = vsub.s32 %v1211, %v1213
    %v1215 = vrot.slane %v1207, %v1214
    %v1217 = vunpack.c.l.s4 1983009808
    %v1218 = vunpack.c.0.s8 %v1217
    %v1219 = vlaneseq
    %v1220 = vshrl.u32 %v1219, 7
    %v1221 = vsub.s32 %v1218, %v1220
    %v1222 = vrot.slane %v1208, %v1221
    %v1223 = vcombine.low %v1215, %v1222
    %v1242 = vunpack.c.l.b16 %v1174
    %v1243 = vunpack.c.l.b16 %v1175
    %v1244 = vunpack.c.l.b16 %v1176
    %v1245 = vunpack.c.l.b16 %v1177
    %v1246 = vunpack.c.l.b16 %v1178
    %v1247 = vunpack.c.l.b16 %v1179
    %v1248 = vunpack.c.l.b16 %v1180
    %v1249 = vunpack.c.l.b16 %v1181
    %v1250 = vunpack.c.l.b16 %v1182
    %v1251 = vunpack.c.l.b16 %v1183
    %v1252 = vunpack.c.l.b16 %v1184
    %v1253 = vunpack.c.l.b16 %v1185
    %v1254 = vunpack.c.l.b16 %v1186
    %v1255 = vunpack.c.l.b16 %v1187
    %v1256 = vunpack.c.l.b16 %v1188
    %v1257 = vunpack.c.l.b16 %v1189
    %v1258 = vpack.c.b16 %v1243, %v1242
    %v1259 = vpack.c.b16 %v1245, %v1244
    %v1260 = vpack.c.b16 %v1247, %v1246
    %v1261 = vpack.c.b16 %v1249, %v1248
    %v1262 = vpack.c.b16 %v1251, %v1250
    %v1263 = vpack.c.b16 %v1253, %v1252
    %v1264 = vpack.c.b16 %v1255, %v1254
    %v1265 = vpack.c.b16 %v1257, %v1256
    %1274 = vmatprep.subr.bf16.mxu0 0
    %1275 = vmatpush1.bf16.msra.mxu0 %v1265
    %1276 = vmatprep.subr.bf16.mxu0 0
    %1277 = vmatpush1.bf16.msra.mxu0 %v1264
    %1278 = vmatprep.subr.bf16.mxu0 0
    %1279 = vmatpush1.bf16.msra.mxu0 %v1263
    %1280 = vmatprep.subr.bf16.mxu0 0
    %1281 = vmatpush1.bf16.msra.mxu0 %v1262
    %1282 = vmatprep.subr.bf16.mxu0 0
    %1283 = vmatpush1.bf16.msra.mxu0 %v1261
    %1284 = vmatprep.subr.bf16.mxu0 0
    %1285 = vmatpush1.bf16.msra.mxu0 %v1260
    %1286 = vmatprep.subr.bf16.mxu0 0
    %1287 = vmatpush1.bf16.msra.mxu0 %v1259
    %1288 = vmatprep.subr.bf16.mxu0 0
    %1289 = vmatpush1.bf16.msra.mxu0 %v1258
    %1290 = vmatprep.subr.bf16.mxu0 0
    %1291 = vmatpush2.bf16.msra.mxu0 0
    %1292 = vmatprep.subr.bf16.mxu0 0
    %1293 = vmatpush2.bf16.msra.mxu0 0
    %1294 = vmatprep.subr.bf16.mxu0 0
    %1295 = vmatpush2.bf16.msra.mxu0 0
    %1296 = vmatprep.subr.bf16.mxu0 0
    %1297 = vmatpush2.bf16.msra.mxu0 0
    %1298 = vmatprep.subr.bf16.mxu0 0
    %1299 = vmatpush2.bf16.msra.mxu0 0
    %1300 = vmatprep.subr.bf16.mxu0 0
    %1301 = vmatpush2.bf16.msra.mxu0 0
    %1302 = vmatprep.subr.bf16.mxu0 0
    %1303 = vmatpush2.bf16.msra.mxu0 0
    %1304 = vmatprep.subr.bf16.mxu0 0
    %1305 = vmatpush2.bf16.msra.mxu0 0
    %1306 = vmatprep.mubr.bf16.mxu0 0
    %1307 = vmatmul.mubr.bf16.gmra.mxu0 %v1206
    %v1308 = vpop.f32.mrf.mxu0
    %v1309 = vadd.f32 0.0, %v1308
    %v1310 = vpop.f32.mrf.mxu0
    %v1311 = vpop.f32.mrf.mxu0
    %v1312 = vadd.f32 0.0, %v1311
    %v1313 = vpop.f32.mrf.mxu0
    %1314 = vmatprep.mubr.bf16.mxu0 0
    %1315 = vmatmul.mubr.bf16.gmra.mxu0 %v1223
    %v1316 = vpop.f32.mrf.mxu0
    %v1317 = vadd.f32 0.0, %v1316
    %v1318 = vpop.f32.mrf.mxu0
    %v1319 = vpop.f32.mrf.mxu0
    %v1320 = vadd.f32 0.0, %v1319
    %v1321 = vpop.f32.mrf.mxu0
    %1322 = vdwg.mxu0
    %v1323 = vadd.f32 %v978, %v1309
    %v1324 = vadd.f32 %v979, %v1312
    %v1325 = vadd.f32 %v980, %v1317
    %v1326 = vadd.f32 %v981, %v1320
    %v1327 = vld [vmem:[%s812] sm:$0x6]
    %v1328 = vld [vmem:[%s812 + $0x4] sm:$0x6]
    %v1329 = vld [vmem:[%s812 + $0x8] sm:$0x6]
    %v1330 = vld [vmem:[%s812 + $0xc] sm:$0x6]
    %v1331 = vld [vmem:[%s812 + $0x18] sm:$0x6]
    %v1332 = vld [vmem:[%s812 + $0x1c] sm:$0x6]
    %v1333 = vld [vmem:[%s812 + $0x20] sm:$0x6]
    %v1334 = vld [vmem:[%s812 + $0x24] sm:$0x6]
    %v1344 = vunpack.c.l.s4 1983009808
    %v1345 = vunpack.c.0.s8 %v1344
    %v1346 = vlaneseq
    %v1347 = vshrl.u32 %v1346, 7
    %v1348 = vsub.s32 %v1345, %v1347
    %v1349 = vrot.slane %v1327, %v1348
    %v1350 = vcombine.high %v1349, %v1349
    %v1352 = vunpack.c.l.s4 1983009808
    %v1353 = vunpack.c.0.s8 %v1352
    %v1354 = vlaneseq
    %v1355 = vshrl.u32 %v1354, 7
    %v1356 = vsub.s32 %v1353, %v1355
    %v1357 = vrot.slane %v1328, %v1356
    %v1358 = vcombine.high %v1357, %v1357
    %v1360 = vunpack.c.l.s4 1983009808
    %v1361 = vunpack.c.0.s8 %v1360
    %v1362 = vlaneseq
    %v1363 = vshrl.u32 %v1362, 7
    %v1364 = vsub.s32 %v1361, %v1363
    %v1365 = vrot.slane %v1329, %v1364
    %v1366 = vcombine.high %v1365, %v1365
    %v1368 = vunpack.c.l.s4 1983009808
    %v1369 = vunpack.c.0.s8 %v1368
    %v1370 = vlaneseq
    %v1371 = vshrl.u32 %v1370, 7
    %v1372 = vsub.s32 %v1369, %v1371
    %v1373 = vrot.slane %v1330, %v1372
    %v1374 = vcombine.high %v1373, %v1373
    %v1376 = vunpack.c.l.s4 1983009808
    %v1377 = vunpack.c.0.s8 %v1376
    %v1378 = vlaneseq
    %v1379 = vshrl.u32 %v1378, 7
    %v1380 = vsub.s32 %v1377, %v1379
    %v1381 = vrot.slane %v1331, %v1380
    %v1382 = vcombine.high %v1381, %v1381
    %v1384 = vunpack.c.l.s4 1983009808
    %v1385 = vunpack.c.0.s8 %v1384
    %v1386 = vlaneseq
    %v1387 = vshrl.u32 %v1386, 7
    %v1388 = vsub.s32 %v1385, %v1387
    %v1389 = vrot.slane %v1332, %v1388
    %v1390 = vcombine.high %v1389, %v1389
    %v1392 = vunpack.c.l.s4 1983009808
    %v1393 = vunpack.c.0.s8 %v1392
    %v1394 = vlaneseq
    %v1395 = vshrl.u32 %v1394, 7
    %v1396 = vsub.s32 %v1393, %v1395
    %v1397 = vrot.slane %v1333, %v1396
    %v1398 = vcombine.high %v1397, %v1397
    %v1400 = vunpack.c.l.s4 1983009808
    %v1401 = vunpack.c.0.s8 %v1400
    %v1402 = vlaneseq
    %v1403 = vshrl.u32 %v1402, 7
    %v1404 = vsub.s32 %v1401, %v1403
    %v1405 = vrot.slane %v1334, %v1404
    %v1406 = vcombine.high %v1405, %v1405
    %v1407 = vrot.slane %v1349, 7
    %v1408 = vrot.slane %v1407, 2
    %v1409 = vrot.slane %v1350, 7
    %v1410 = vsel %vm626, %v1408, %v1409
    %v1411 = vrot.slane %v1357, 7
    %v1412 = vrot.slane %v1411, 2
    %v1413 = vrot.slane %v1358, 7
    %v1414 = vsel %vm626, %v1412, %v1413
    %v1415 = vrot.slane %v1365, 7
    %v1416 = vrot.slane %v1415, 2
    %v1417 = vrot.slane %v1366, 7
    %v1418 = vsel %vm626, %v1416, %v1417
    %v1419 = vrot.slane %v1373, 7
    %v1420 = vrot.slane %v1419, 2
    %v1421 = vrot.slane %v1374, 7
    %v1422 = vsel %vm626, %v1420, %v1421
    %v1423 = vrot.slane %v1381, 7
    %v1424 = vrot.slane %v1423, 2
    %v1425 = vrot.slane %v1382, 7
    %v1426 = vsel %vm626, %v1424, %v1425
    %v1427 = vrot.slane %v1389, 7
    %v1428 = vrot.slane %v1427, 2
    %v1429 = vrot.slane %v1390, 7
    %v1430 = vsel %vm626, %v1428, %v1429
    %v1431 = vrot.slane %v1397, 7
    %v1432 = vrot.slane %v1431, 2
    %v1433 = vrot.slane %v1398, 7
    %v1434 = vsel %vm626, %v1432, %v1433
    %v1435 = vrot.slane %v1405, 7
    %v1436 = vrot.slane %v1435, 2
    %v1437 = vrot.slane %v1406, 7
    %v1438 = vsel %vm626, %v1436, %v1437
    %v1439 = vld [vmem:[#allocation2 + $0x140] sm:$0xf]
    %v1440 = vld [vmem:[#allocation2 + $0x144] sm:$0xf]
    %v1441 = vld [vmem:[#allocation2 + $0x148] sm:$0xf]
    %v1442 = vld [vmem:[#allocation2 + $0x14c] sm:$0xf]
    %v1443 = vld [vmem:[#allocation2 + $0x150] sm:$0xf]
    %v1444 = vld [vmem:[#allocation2 + $0x154] sm:$0xf]
    %v1445 = vld [vmem:[#allocation2 + $0x158] sm:$0xf]
    %v1446 = vld [vmem:[#allocation2 + $0x15c] sm:$0xf]
    %v1447 = vld [vmem:[#allocation2 + $0x160] sm:$0xf]
    %v1448 = vld [vmem:[#allocation2 + $0x164] sm:$0xf]
    %v1449 = vld [vmem:[#allocation2 + $0x168] sm:$0xf]
    %v1450 = vld [vmem:[#allocation2 + $0x16c] sm:$0xf]
    %v1451 = vld [vmem:[#allocation2 + $0x170] sm:$0xf]
    %v1452 = vld [vmem:[#allocation2 + $0x174] sm:$0xf]
    %v1453 = vld [vmem:[#allocation2 + $0x178] sm:$0xf]
    %v1454 = vld [vmem:[#allocation2 + $0x17c] sm:$0xf]
    %v1455 = vcombine.low %v1410, %v1414
    %v1456 = vcombine.low %v1418, %v1422
    %v1458 = vunpack.c.l.s4 1983009808
    %v1459 = vunpack.c.0.s8 %v1458
    %v1460 = vlaneseq
    %v1461 = vshrl.u32 %v1460, 7
    %v1462 = vsub.s32 %v1459, %v1461
    %v1463 = vrot.slane %v1455, %v1462
    %v1465 = vunpack.c.l.s4 1983009808
    %v1466 = vunpack.c.0.s8 %v1465
    %v1467 = vlaneseq
    %v1468 = vshrl.u32 %v1467, 7
    %v1469 = vsub.s32 %v1466, %v1468
    %v1470 = vrot.slane %v1456, %v1469
    %v1471 = vcombine.low %v1463, %v1470
    %v1472 = vcombine.low %v1426, %v1430
    %v1473 = vcombine.low %v1434, %v1438
    %v1475 = vunpack.c.l.s4 1983009808
    %v1476 = vunpack.c.0.s8 %v1475
    %v1477 = vlaneseq
    %v1478 = vshrl.u32 %v1477, 7
    %v1479 = vsub.s32 %v1476, %v1478
    %v1480 = vrot.slane %v1472, %v1479
    %v1482 = vunpack.c.l.s4 1983009808
    %v1483 = vunpack.c.0.s8 %v1482
    %v1484 = vlaneseq
    %v1485 = vshrl.u32 %v1484, 7
    %v1486 = vsub.s32 %v1483, %v1485
    %v1487 = vrot.slane %v1473, %v1486
    %v1488 = vcombine.low %v1480, %v1487
    %v1507 = vunpack.c.l.b16 %v1439
    %v1508 = vunpack.c.l.b16 %v1440
    %v1509 = vunpack.c.l.b16 %v1441
    %v1510 = vunpack.c.l.b16 %v1442
    %v1511 = vunpack.c.l.b16 %v1443
    %v1512 = vunpack.c.l.b16 %v1444
    %v1513 = vunpack.c.l.b16 %v1445
    %v1514 = vunpack.c.l.b16 %v1446
    %v1515 = vunpack.c.l.b16 %v1447
    %v1516 = vunpack.c.l.b16 %v1448
    %v1517 = vunpack.c.l.b16 %v1449
    %v1518 = vunpack.c.l.b16 %v1450
    %v1519 = vunpack.c.l.b16 %v1451
    %v1520 = vunpack.c.l.b16 %v1452
    %v1521 = vunpack.c.l.b16 %v1453
    %v1522 = vunpack.c.l.b16 %v1454
    %v1523 = vpack.c.b16 %v1508, %v1507
    %v1524 = vpack.c.b16 %v1510, %v1509
    %v1525 = vpack.c.b16 %v1512, %v1511
    %v1526 = vpack.c.b16 %v1514, %v1513
    %v1527 = vpack.c.b16 %v1516, %v1515
    %v1528 = vpack.c.b16 %v1518, %v1517
    %v1529 = vpack.c.b16 %v1520, %v1519
    %v1530 = vpack.c.b16 %v1522, %v1521
    %1539 = vmatprep.subr.bf16.mxu0 0
    %1540 = vmatpush1.bf16.msra.mxu0 %v1530
    %1541 = vmatprep.subr.bf16.mxu0 0
    %1542 = vmatpush1.bf16.msra.mxu0 %v1529
    %1543 = vmatprep.subr.bf16.mxu0 0
    %1544 = vmatpush1.bf16.msra.mxu0 %v1528
    %1545 = vmatprep.subr.bf16.mxu0 0
    %1546 = vmatpush1.bf16.msra.mxu0 %v1527
    %1547 = vmatprep.subr.bf16.mxu0 0
    %1548 = vmatpush1.bf16.msra.mxu0 %v1526
    %1549 = vmatprep.subr.bf16.mxu0 0
    %1550 = vmatpush1.bf16.msra.mxu0 %v1525
    %1551 = vmatprep.subr.bf16.mxu0 0
    %1552 = vmatpush1.bf16.msra.mxu0 %v1524
    %1553 = vmatprep.subr.bf16.mxu0 0
    %1554 = vmatpush1.bf16.msra.mxu0 %v1523
    %1555 = vmatprep.subr.bf16.mxu0 0
    %1556 = vmatpush2.bf16.msra.mxu0 0
    %1557 = vmatprep.subr.bf16.mxu0 0
    %1558 = vmatpush2.bf16.msra.mxu0 0
    %1559 = vmatprep.subr.bf16.mxu0 0
    %1560 = vmatpush2.bf16.msra.mxu0 0
    %1561 = vmatprep.subr.bf16.mxu0 0
    %1562 = vmatpush2.bf16.msra.mxu0 0
    %1563 = vmatprep.subr.bf16.mxu0 0
    %1564 = vmatpush2.bf16.msra.mxu0 0
    %1565 = vmatprep.subr.bf16.mxu0 0
    %1566 = vmatpush2.bf16.msra.mxu0 0
    %1567 = vmatprep.subr.bf16.mxu0 0
    %1568 = vmatpush2.bf16.msra.mxu0 0
    %1569 = vmatprep.subr.bf16.mxu0 0
    %1570 = vmatpush2.bf16.msra.mxu0 0
    %1571 = vmatprep.mubr.bf16.mxu0 0
    %1572 = vmatmul.mubr.bf16.gmra.mxu0 %v1471
    %v1573 = vpop.f32.mrf.mxu0
    %v1574 = vadd.f32 0.0, %v1573
    %v1575 = vpop.f32.mrf.mxu0
    %v1576 = vpop.f32.mrf.mxu0
    %v1577 = vadd.f32 0.0, %v1576
    %v1578 = vpop.f32.mrf.mxu0
    %1579 = vmatprep.mubr.bf16.mxu0 0
    %1580 = vmatmul.mubr.bf16.gmra.mxu0 %v1488
    %v1581 = vpop.f32.mrf.mxu0
    %v1582 = vadd.f32 0.0, %v1581
    %v1583 = vpop.f32.mrf.mxu0
    %v1584 = vpop.f32.mrf.mxu0
    %v1585 = vadd.f32 0.0, %v1584
    %v1586 = vpop.f32.mrf.mxu0
    %1587 = vdwg.mxu0
    %v1588 = vadd.f32 %v1323, %v1574
    %v1589 = vadd.f32 %v1324, %v1577
    %v1590 = vadd.f32 %v1325, %v1582
    %v1591 = vadd.f32 %v1326, %v1585
    %s1592 = scalar_lea.vmem %s0, 8
    %v1593 = vld [vmem:[%s1592] sm:$0x3]
    %v1594 = vld [vmem:[%s1592 + $0x4] sm:$0x3]
    %v1595 = vld [vmem:[%s1592 + $0x8] sm:$0x3]
    %v1596 = vld [vmem:[%s1592 + $0xc] sm:$0x3]
    %v1597 = vld [vmem:[%s1592 + $0x18] sm:$0x3]
    %v1598 = vld [vmem:[%s1592 + $0x1c] sm:$0x3]
    %v1599 = vld [vmem:[%s1592 + $0x20] sm:$0x3]
    %v1600 = vld [vmem:[%s1592 + $0x24] sm:$0x3]
    %v1601 = vld [vmem:[#allocation2 + $0x180] sm:$0xf]
    %v1602 = vld [vmem:[#allocation2 + $0x184] sm:$0xf]
    %v1603 = vld [vmem:[#allocation2 + $0x188] sm:$0xf]
    %v1604 = vld [vmem:[#allocation2 + $0x18c] sm:$0xf]
    %v1605 = vld [vmem:[#allocation2 + $0x190] sm:$0xf]
    %v1606 = vld [vmem:[#allocation2 + $0x194] sm:$0xf]
    %v1607 = vld [vmem:[#allocation2 + $0x198] sm:$0xf]
    %v1608 = vld [vmem:[#allocation2 + $0x19c] sm:$0xf]
    %v1609 = vld [vmem:[#allocation2 + $0x1a0] sm:$0xf]
    %v1610 = vld [vmem:[#allocation2 + $0x1a4] sm:$0xf]
    %v1611 = vld [vmem:[#allocation2 + $0x1a8] sm:$0xf]
    %v1612 = vld [vmem:[#allocation2 + $0x1ac] sm:$0xf]
    %v1613 = vld [vmem:[#allocation2 + $0x1b0] sm:$0xf]
    %v1614 = vld [vmem:[#allocation2 + $0x1b4] sm:$0xf]
    %v1615 = vld [vmem:[#allocation2 + $0x1b8] sm:$0xf]
    %v1616 = vld [vmem:[#allocation2 + $0x1bc] sm:$0xf]
    %v1625 = vcombine.low %v1593, %v1594
    %v1626 = vcombine.low %v1595, %v1596
    %v1628 = vunpack.c.l.s4 1983009808
    %v1629 = vunpack.c.0.s8 %v1628
    %v1630 = vlaneseq
    %v1631 = vshrl.u32 %v1630, 7
    %v1632 = vsub.s32 %v1629, %v1631
    %v1633 = vrot.slane %v1625, %v1632
    %v1635 = vunpack.c.l.s4 1983009808
    %v1636 = vunpack.c.0.s8 %v1635
    %v1637 = vlaneseq
    %v1638 = vshrl.u32 %v1637, 7
    %v1639 = vsub.s32 %v1636, %v1638
    %v1640 = vrot.slane %v1626, %v1639
    %v1641 = vcombine.low %v1633, %v1640
    %v1642 = vcombine.low %v1597, %v1598
    %v1643 = vcombine.low %v1599, %v1600
    %v1645 = vunpack.c.l.s4 1983009808
    %v1646 = vunpack.c.0.s8 %v1645
    %v1647 = vlaneseq
    %v1648 = vshrl.u32 %v1647, 7
    %v1649 = vsub.s32 %v1646, %v1648
    %v1650 = vrot.slane %v1642, %v1649
    %v1652 = vunpack.c.l.s4 1983009808
    %v1653 = vunpack.c.0.s8 %v1652
    %v1654 = vlaneseq
    %v1655 = vshrl.u32 %v1654, 7
    %v1656 = vsub.s32 %v1653, %v1655
    %v1657 = vrot.slane %v1643, %v1656
    %v1658 = vcombine.low %v1650, %v1657
    %v1677 = vunpack.c.l.b16 %v1601
    %v1678 = vunpack.c.l.b16 %v1602
    %v1679 = vunpack.c.l.b16 %v1603
    %v1680 = vunpack.c.l.b16 %v1604
    %v1681 = vunpack.c.l.b16 %v1605
    %v1682 = vunpack.c.l.b16 %v1606
    %v1683 = vunpack.c.l.b16 %v1607
    %v1684 = vunpack.c.l.b16 %v1608
    %v1685 = vunpack.c.l.b16 %v1609
    %v1686 = vunpack.c.l.b16 %v1610
    %v1687 = vunpack.c.l.b16 %v1611
    %v1688 = vunpack.c.l.b16 %v1612
    %v1689 = vunpack.c.l.b16 %v1613
    %v1690 = vunpack.c.l.b16 %v1614
    %v1691 = vunpack.c.l.b16 %v1615
    %v1692 = vunpack.c.l.b16 %v1616
    %v1693 = vpack.c.b16 %v1678, %v1677
    %v1694 = vpack.c.b16 %v1680, %v1679
    %v1695 = vpack.c.b16 %v1682, %v1681
    %v1696 = vpack.c.b16 %v1684, %v1683
    %v1697 = vpack.c.b16 %v1686, %v1685
    %v1698 = vpack.c.b16 %v1688, %v1687
    %v1699 = vpack.c.b16 %v1690, %v1689
    %v1700 = vpack.c.b16 %v1692, %v1691
    %1709 = vmatprep.subr.bf16.mxu0 0
    %1710 = vmatpush1.bf16.msra.mxu0 %v1700
    %1711 = vmatprep.subr.bf16.mxu0 0
    %1712 = vmatpush1.bf16.msra.mxu0 %v1699
    %1713 = vmatprep.subr.bf16.mxu0 0
    %1714 = vmatpush1.bf16.msra.mxu0 %v1698
    %1715 = vmatprep.subr.bf16.mxu0 0
    %1716 = vmatpush1.bf16.msra.mxu0 %v1697
    %1717 = vmatprep.subr.bf16.mxu0 0
    %1718 = vmatpush1.bf16.msra.mxu0 %v1696
    %1719 = vmatprep.subr.bf16.mxu0 0
    %1720 = vmatpush1.bf16.msra.mxu0 %v1695
    %1721 = vmatprep.subr.bf16.mxu0 0
    %1722 = vmatpush1.bf16.msra.mxu0 %v1694
    %1723 = vmatprep.subr.bf16.mxu0 0
    %1724 = vmatpush1.bf16.msra.mxu0 %v1693
    %1725 = vmatprep.subr.bf16.mxu0 0
    %1726 = vmatpush2.bf16.msra.mxu0 0
    %1727 = vmatprep.subr.bf16.mxu0 0
    %1728 = vmatpush2.bf16.msra.mxu0 0
    %1729 = vmatprep.subr.bf16.mxu0 0
    %1730 = vmatpush2.bf16.msra.mxu0 0
    %1731 = vmatprep.subr.bf16.mxu0 0
    %1732 = vmatpush2.bf16.msra.mxu0 0
    %1733 = vmatprep.subr.bf16.mxu0 0
    %1734 = vmatpush2.bf16.msra.mxu0 0
    %1735 = vmatprep.subr.bf16.mxu0 0
    %1736 = vmatpush2.bf16.msra.mxu0 0
    %1737 = vmatprep.subr.bf16.mxu0 0
    %1738 = vmatpush2.bf16.msra.mxu0 0
    %1739 = vmatprep.subr.bf16.mxu0 0
    %1740 = vmatpush2.bf16.msra.mxu0 0
    %1741 = vmatprep.mubr.bf16.mxu0 0
    %1742 = vmatmul.mubr.bf16.gmra.mxu0 %v1641
    %v1743 = vpop.f32.mrf.mxu0
    %v1744 = vadd.f32 0.0, %v1743
    %v1745 = vpop.f32.mrf.mxu0
    %v1746 = vpop.f32.mrf.mxu0
    %v1747 = vadd.f32 0.0, %v1746
    %v1748 = vpop.f32.mrf.mxu0
    %1749 = vmatprep.mubr.bf16.mxu0 0
    %1750 = vmatmul.mubr.bf16.gmra.mxu0 %v1658
    %v1751 = vpop.f32.mrf.mxu0
    %v1752 = vadd.f32 0.0, %v1751
    %v1753 = vpop.f32.mrf.mxu0
    %v1754 = vpop.f32.mrf.mxu0
    %v1755 = vadd.f32 0.0, %v1754
    %v1756 = vpop.f32.mrf.mxu0
    %1757 = vdwg.mxu0
    %v1758 = vadd.f32 %v1588, %v1744
    %v1759 = vadd.f32 %v1589, %v1747
    %v1760 = vadd.f32 %v1590, %v1752
    %v1761 = vadd.f32 %v1591, %v1755
    %v1762 = vld [vmem:[%s1592] sm:$0x7]
    %v1763 = vld [vmem:[%s1592 + $0x4] sm:$0x7]
    %v1764 = vld [vmem:[%s1592 + $0x8] sm:$0x7]
    %v1765 = vld [vmem:[%s1592 + $0xc] sm:$0x7]
    %v1766 = vld [vmem:[%s1592 + $0x18] sm:$0x7]
    %v1767 = vld [vmem:[%s1592 + $0x1c] sm:$0x7]
    %v1768 = vld [vmem:[%s1592 + $0x20] sm:$0x7]
    %v1769 = vld [vmem:[%s1592 + $0x24] sm:$0x7]
    %v1779 = vunpack.c.l.s4 1983009808
    %v1780 = vunpack.c.0.s8 %v1779
    %v1781 = vlaneseq
    %v1782 = vshrl.u32 %v1781, 7
    %v1783 = vsub.s32 %v1780, %v1782
    %v1784 = vrot.slane %v1762, %v1783
    %v1785 = vcombine.high %v1784, %v1784
    %v1787 = vunpack.c.l.s4 1983009808
    %v1788 = vunpack.c.0.s8 %v1787
    %v1789 = vlaneseq
    %v1790 = vshrl.u32 %v1789, 7
    %v1791 = vsub.s32 %v1788, %v1790
    %v1792 = vrot.slane %v1763, %v1791
    %v1793 = vcombine.high %v1792, %v1792
    %v1795 = vunpack.c.l.s4 1983009808
    %v1796 = vunpack.c.0.s8 %v1795
    %v1797 = vlaneseq
    %v1798 = vshrl.u32 %v1797, 7
    %v1799 = vsub.s32 %v1796, %v1798
    %v1800 = vrot.slane %v1764, %v1799
    %v1801 = vcombine.high %v1800, %v1800
    %v1803 = vunpack.c.l.s4 1983009808
    %v1804 = vunpack.c.0.s8 %v1803
    %v1805 = vlaneseq
    %v1806 = vshrl.u32 %v1805, 7
    %v1807 = vsub.s32 %v1804, %v1806
    %v1808 = vrot.slane %v1765, %v1807
    %v1809 = vcombine.high %v1808, %v1808
    %v1811 = vunpack.c.l.s4 1983009808
    %v1812 = vunpack.c.0.s8 %v1811
    %v1813 = vlaneseq
    %v1814 = vshrl.u32 %v1813, 7
    %v1815 = vsub.s32 %v1812, %v1814
    %v1816 = vrot.slane %v1766, %v1815
    %v1817 = vcombine.high %v1816, %v1816
    %v1819 = vunpack.c.l.s4 1983009808
    %v1820 = vunpack.c.0.s8 %v1819
    %v1821 = vlaneseq
    %v1822 = vshrl.u32 %v1821, 7
    %v1823 = vsub.s32 %v1820, %v1822
    %v1824 = vrot.slane %v1767, %v1823
    %v1825 = vcombine.high %v1824, %v1824
    %v1827 = vunpack.c.l.s4 1983009808
    %v1828 = vunpack.c.0.s8 %v1827
    %v1829 = vlaneseq
    %v1830 = vshrl.u32 %v1829, 7
    %v1831 = vsub.s32 %v1828, %v1830
    %v1832 = vrot.slane %v1768, %v1831
    %v1833 = vcombine.high %v1832, %v1832
    %v1835 = vunpack.c.l.s4 1983009808
    %v1836 = vunpack.c.0.s8 %v1835
    %v1837 = vlaneseq
    %v1838 = vshrl.u32 %v1837, 7
    %v1839 = vsub.s32 %v1836, %v1838
    %v1840 = vrot.slane %v1769, %v1839
    %v1841 = vcombine.high %v1840, %v1840
    %v1843 = vshrl.u32 %v1784, 16
    %v1845 = vrot.slane %v1843, 6
    %v1846 = vshll.u32 %v1784, 16
    %v1848 = vrot.slane %v1846, 7
    %v1849 = vor.u32 %v1845, %v1848
    %v1850 = vrot.slane %v1849, 2
    %v1852 = vshll.u32 %v1785, 16
    %v1854 = vrot.slane %v1852, 7
    %v1855 = vsel %vm137, %v1850, %v1854
    %v1857 = vshrl.u32 %v1792, 16
    %v1859 = vrot.slane %v1857, 6
    %v1860 = vshll.u32 %v1792, 16
    %v1862 = vrot.slane %v1860, 7
    %v1863 = vor.u32 %v1859, %v1862
    %v1864 = vrot.slane %v1863, 2
    %v1866 = vshll.u32 %v1793, 16
    %v1868 = vrot.slane %v1866, 7
    %v1869 = vsel %vm137, %v1864, %v1868
    %v1871 = vshrl.u32 %v1800, 16
    %v1873 = vrot.slane %v1871, 6
    %v1874 = vshll.u32 %v1800, 16
    %v1876 = vrot.slane %v1874, 7
    %v1877 = vor.u32 %v1873, %v1876
    %v1878 = vrot.slane %v1877, 2
    %v1880 = vshll.u32 %v1801, 16
    %v1882 = vrot.slane %v1880, 7
    %v1883 = vsel %vm137, %v1878, %v1882
    %v1885 = vshrl.u32 %v1808, 16
    %v1887 = vrot.slane %v1885, 6
    %v1888 = vshll.u32 %v1808, 16
    %v1890 = vrot.slane %v1888, 7
    %v1891 = vor.u32 %v1887, %v1890
    %v1892 = vrot.slane %v1891, 2
    %v1894 = vshll.u32 %v1809, 16
    %v1896 = vrot.slane %v1894, 7
    %v1897 = vsel %vm137, %v1892, %v1896
    %v1899 = vshrl.u32 %v1816, 16
    %v1901 = vrot.slane %v1899, 6
    %v1902 = vshll.u32 %v1816, 16
    %v1904 = vrot.slane %v1902, 7
    %v1905 = vor.u32 %v1901, %v1904
    %v1906 = vrot.slane %v1905, 2
    %v1908 = vshll.u32 %v1817, 16
    %v1910 = vrot.slane %v1908, 7
    %v1911 = vsel %vm137, %v1906, %v1910
    %v1913 = vshrl.u32 %v1824, 16
    %v1915 = vrot.slane %v1913, 6
    %v1916 = vshll.u32 %v1824, 16
    %v1918 = vrot.slane %v1916, 7
    %v1919 = vor.u32 %v1915, %v1918
    %v1920 = vrot.slane %v1919, 2
    %v1922 = vshll.u32 %v1825, 16
    %v1924 = vrot.slane %v1922, 7
    %v1925 = vsel %vm137, %v1920, %v1924
    %v1927 = vshrl.u32 %v1832, 16
    %v1929 = vrot.slane %v1927, 6
    %v1930 = vshll.u32 %v1832, 16
    %v1932 = vrot.slane %v1930, 7
    %v1933 = vor.u32 %v1929, %v1932
    %v1934 = vrot.slane %v1933, 2
    %v1936 = vshll.u32 %v1833, 16
    %v1938 = vrot.slane %v1936, 7
    %v1939 = vsel %vm137, %v1934, %v1938
    %v1941 = vshrl.u32 %v1840, 16
    %v1943 = vrot.slane %v1941, 6
    %v1944 = vshll.u32 %v1840, 16
    %v1946 = vrot.slane %v1944, 7
    %v1947 = vor.u32 %v1943, %v1946
    %v1948 = vrot.slane %v1947, 2
    %v1950 = vshll.u32 %v1841, 16
    %v1952 = vrot.slane %v1950, 7
    %v1953 = vsel %vm137, %v1948, %v1952
    %v1954 = vld [vmem:[#allocation2 + $0x1c0] sm:$0xf]
    %v1955 = vld [vmem:[#allocation2 + $0x1c4] sm:$0xf]
    %v1956 = vld [vmem:[#allocation2 + $0x1c8] sm:$0xf]
    %v1957 = vld [vmem:[#allocation2 + $0x1cc] sm:$0xf]
    %v1958 = vld [vmem:[#allocation2 + $0x1d0] sm:$0xf]
    %v1959 = vld [vmem:[#allocation2 + $0x1d4] sm:$0xf]
    %v1960 = vld [vmem:[#allocation2 + $0x1d8] sm:$0xf]
    %v1961 = vld [vmem:[#allocation2 + $0x1dc] sm:$0xf]
    %v1962 = vld [vmem:[#allocation2 + $0x1e0] sm:$0xf]
    %v1963 = vld [vmem:[#allocation2 + $0x1e4] sm:$0xf]
    %v1964 = vld [vmem:[#allocation2 + $0x1e8] sm:$0xf]
    %v1965 = vld [vmem:[#allocation2 + $0x1ec] sm:$0xf]
    %v1966 = vld [vmem:[#allocation2 + $0x1f0] sm:$0xf]
    %v1967 = vld [vmem:[#allocation2 + $0x1f4] sm:$0xf]
    %v1968 = vld [vmem:[#allocation2 + $0x1f8] sm:$0xf]
    %v1969 = vld [vmem:[#allocation2 + $0x1fc] sm:$0xf]
    %v1970 = vcombine.low %v1855, %v1869
    %v1971 = vcombine.low %v1883, %v1897
    %v1973 = vunpack.c.l.s4 1983009808
    %v1974 = vunpack.c.0.s8 %v1973
    %v1975 = vlaneseq
    %v1976 = vshrl.u32 %v1975, 7
    %v1977 = vsub.s32 %v1974, %v1976
    %v1978 = vrot.slane %v1970, %v1977
    %v1980 = vunpack.c.l.s4 1983009808
    %v1981 = vunpack.c.0.s8 %v1980
    %v1982 = vlaneseq
    %v1983 = vshrl.u32 %v1982, 7
    %v1984 = vsub.s32 %v1981, %v1983
    %v1985 = vrot.slane %v1971, %v1984
    %v1986 = vcombine.low %v1978, %v1985
    %v1987 = vcombine.low %v1911, %v1925
    %v1988 = vcombine.low %v1939, %v1953
    %v1990 = vunpack.c.l.s4 1983009808
    %v1991 = vunpack.c.0.s8 %v1990
    %v1992 = vlaneseq
    %v1993 = vshrl.u32 %v1992, 7
    %v1994 = vsub.s32 %v1991, %v1993
    %v1995 = vrot.slane %v1987, %v1994
    %v1997 = vunpack.c.l.s4 1983009808
    %v1998 = vunpack.c.0.s8 %v1997
    %v1999 = vlaneseq
    %v2000 = vshrl.u32 %v1999, 7
    %v2001 = vsub.s32 %v1998, %v2000
    %v2002 = vrot.slane %v1988, %v2001
    %v2003 = vcombine.low %v1995, %v2002
    %v2022 = vunpack.c.l.b16 %v1954
    %v2023 = vunpack.c.l.b16 %v1955
    %v2024 = vunpack.c.l.b16 %v1956
    %v2025 = vunpack.c.l.b16 %v1957
    %v2026 = vunpack.c.l.b16 %v1958
    %v2027 = vunpack.c.l.b16 %v1959
    %v2028 = vunpack.c.l.b16 %v1960
    %v2029 = vunpack.c.l.b16 %v1961
    %v2030 = vunpack.c.l.b16 %v1962
    %v2031 = vunpack.c.l.b16 %v1963
    %v2032 = vunpack.c.l.b16 %v1964
    %v2033 = vunpack.c.l.b16 %v1965
    %v2034 = vunpack.c.l.b16 %v1966
    %v2035 = vunpack.c.l.b16 %v1967
    %v2036 = vunpack.c.l.b16 %v1968
    %v2037 = vunpack.c.l.b16 %v1969
    %v2038 = vpack.c.b16 %v2023, %v2022
    %v2039 = vpack.c.b16 %v2025, %v2024
    %v2040 = vpack.c.b16 %v2027, %v2026
    %v2041 = vpack.c.b16 %v2029, %v2028
    %v2042 = vpack.c.b16 %v2031, %v2030
    %v2043 = vpack.c.b16 %v2033, %v2032
    %v2044 = vpack.c.b16 %v2035, %v2034
    %v2045 = vpack.c.b16 %v2037, %v2036
    %2054 = vmatprep.subr.bf16.mxu0 0
    %2055 = vmatpush1.bf16.msra.mxu0 %v2045
    %2056 = vmatprep.subr.bf16.mxu0 0
    %2057 = vmatpush1.bf16.msra.mxu0 %v2044
    %2058 = vmatprep.subr.bf16.mxu0 0
    %2059 = vmatpush1.bf16.msra.mxu0 %v2043
    %2060 = vmatprep.subr.bf16.mxu0 0
    %2061 = vmatpush1.bf16.msra.mxu0 %v2042
    %2062 = vmatprep.subr.bf16.mxu0 0
    %2063 = vmatpush1.bf16.msra.mxu0 %v2041
    %2064 = vmatprep.subr.bf16.mxu0 0
    %2065 = vmatpush1.bf16.msra.mxu0 %v2040
    %2066 = vmatprep.subr.bf16.mxu0 0
    %2067 = vmatpush1.bf16.msra.mxu0 %v2039
    %2068 = vmatprep.subr.bf16.mxu0 0
    %2069 = vmatpush1.bf16.msra.mxu0 %v2038
    %2070 = vmatprep.subr.bf16.mxu0 0
    %2071 = vmatpush2.bf16.msra.mxu0 0
    %2072 = vmatprep.subr.bf16.mxu0 0
    %2073 = vmatpush2.bf16.msra.mxu0 0
    %2074 = vmatprep.subr.bf16.mxu0 0
    %2075 = vmatpush2.bf16.msra.mxu0 0
    %2076 = vmatprep.subr.bf16.mxu0 0
    %2077 = vmatpush2.bf16.msra.mxu0 0
    %2078 = vmatprep.subr.bf16.mxu0 0
    %2079 = vmatpush2.bf16.msra.mxu0 0
    %2080 = vmatprep.subr.bf16.mxu0 0
    %2081 = vmatpush2.bf16.msra.mxu0 0
    %2082 = vmatprep.subr.bf16.mxu0 0
    %2083 = vmatpush2.bf16.msra.mxu0 0
    %2084 = vmatprep.subr.bf16.mxu0 0
    %2085 = vmatpush2.bf16.msra.mxu0 0
    %2086 = vmatprep.mubr.bf16.mxu0 0
    %2087 = vmatmul.mubr.bf16.gmra.mxu0 %v1986
    %v2088 = vpop.f32.mrf.mxu0
    %v2089 = vadd.f32 0.0, %v2088
    %v2090 = vpop.f32.mrf.mxu0
    %v2091 = vpop.f32.mrf.mxu0
    %v2092 = vadd.f32 0.0, %v2091
    %v2093 = vpop.f32.mrf.mxu0
    %2094 = vmatprep.mubr.bf16.mxu0 0
    %2095 = vmatmul.mubr.bf16.gmra.mxu0 %v2003
    %v2096 = vpop.f32.mrf.mxu0
    %v2097 = vadd.f32 0.0, %v2096
    %v2098 = vpop.f32.mrf.mxu0
    %v2099 = vpop.f32.mrf.mxu0
    %v2100 = vadd.f32 0.0, %v2099
    %v2101 = vpop.f32.mrf.mxu0
    %2102 = vdwg.mxu0
    %v2103 = vadd.f32 %v1758, %v2089
    %v2104 = vadd.f32 %v1759, %v2092
    %v2105 = vadd.f32 %v1760, %v2097
    %v2106 = vadd.f32 %v1761, %v2100
    %v2107 = vld [vmem:[%s1592] sm:$0x6]
    %v2108 = vld [vmem:[%s1592 + $0x4] sm:$0x6]
    %v2109 = vld [vmem:[%s1592 + $0x8] sm:$0x6]
    %v2110 = vld [vmem:[%s1592 + $0xc] sm:$0x6]
    %v2111 = vld [vmem:[%s1592 + $0x18] sm:$0x6]
    %v2112 = vld [vmem:[%s1592 + $0x1c] sm:$0x6]
    %v2113 = vld [vmem:[%s1592 + $0x20] sm:$0x6]
    %v2114 = vld [vmem:[%s1592 + $0x24] sm:$0x6]
    %v2124 = vunpack.c.l.s4 1983009808
    %v2125 = vunpack.c.0.s8 %v2124
    %v2126 = vlaneseq
    %v2127 = vshrl.u32 %v2126, 7
    %v2128 = vsub.s32 %v2125, %v2127
    %v2129 = vrot.slane %v2107, %v2128
    %v2130 = vcombine.high %v2129, %v2129
    %v2132 = vunpack.c.l.s4 1983009808
    %v2133 = vunpack.c.0.s8 %v2132
    %v2134 = vlaneseq
    %v2135 = vshrl.u32 %v2134, 7
    %v2136 = vsub.s32 %v2133, %v2135
    %v2137 = vrot.slane %v2108, %v2136
    %v2138 = vcombine.high %v2137, %v2137
    %v2140 = vunpack.c.l.s4 1983009808
    %v2141 = vunpack.c.0.s8 %v2140
    %v2142 = vlaneseq
    %v2143 = vshrl.u32 %v2142, 7
    %v2144 = vsub.s32 %v2141, %v2143
    %v2145 = vrot.slane %v2109, %v2144
    %v2146 = vcombine.high %v2145, %v2145
    %v2148 = vunpack.c.l.s4 1983009808
    %v2149 = vunpack.c.0.s8 %v2148
    %v2150 = vlaneseq
    %v2151 = vshrl.u32 %v2150, 7
    %v2152 = vsub.s32 %v2149, %v2151
    %v2153 = vrot.slane %v2110, %v2152
    %v2154 = vcombine.high %v2153, %v2153
    %v2156 = vunpack.c.l.s4 1983009808
    %v2157 = vunpack.c.0.s8 %v2156
    %v2158 = vlaneseq
    %v2159 = vshrl.u32 %v2158, 7
    %v2160 = vsub.s32 %v2157, %v2159
    %v2161 = vrot.slane %v2111, %v2160
    %v2162 = vcombine.high %v2161, %v2161
    %v2164 = vunpack.c.l.s4 1983009808
    %v2165 = vunpack.c.0.s8 %v2164
    %v2166 = vlaneseq
    %v2167 = vshrl.u32 %v2166, 7
    %v2168 = vsub.s32 %v2165, %v2167
    %v2169 = vrot.slane %v2112, %v2168
    %v2170 = vcombine.high %v2169, %v2169
    %v2172 = vunpack.c.l.s4 1983009808
    %v2173 = vunpack.c.0.s8 %v2172
    %v2174 = vlaneseq
    %v2175 = vshrl.u32 %v2174, 7
    %v2176 = vsub.s32 %v2173, %v2175
    %v2177 = vrot.slane %v2113, %v2176
    %v2178 = vcombine.high %v2177, %v2177
    %v2180 = vunpack.c.l.s4 1983009808
    %v2181 = vunpack.c.0.s8 %v2180
    %v2182 = vlaneseq
    %v2183 = vshrl.u32 %v2182, 7
    %v2184 = vsub.s32 %v2181, %v2183
    %v2185 = vrot.slane %v2114, %v2184
    %v2186 = vcombine.high %v2185, %v2185
    %v2187 = vrot.slane %v2129, 7
    %v2188 = vrot.slane %v2187, 2
    %v2189 = vrot.slane %v2130, 7
    %v2190 = vsel %vm626, %v2188, %v2189
    %v2191 = vrot.slane %v2137, 7
    %v2192 = vrot.slane %v2191, 2
    %v2193 = vrot.slane %v2138, 7
    %v2194 = vsel %vm626, %v2192, %v2193
    %v2195 = vrot.slane %v2145, 7
    %v2196 = vrot.slane %v2195, 2
    %v2197 = vrot.slane %v2146, 7
    %v2198 = vsel %vm626, %v2196, %v2197
    %v2199 = vrot.slane %v2153, 7
    %v2200 = vrot.slane %v2199, 2
    %v2201 = vrot.slane %v2154, 7
    %v2202 = vsel %vm626, %v2200, %v2201
    %v2203 = vrot.slane %v2161, 7
    %v2204 = vrot.slane %v2203, 2
    %v2205 = vrot.slane %v2162, 7
    %v2206 = vsel %vm626, %v2204, %v2205
    %v2207 = vrot.slane %v2169, 7
    %v2208 = vrot.slane %v2207, 2
    %v2209 = vrot.slane %v2170, 7
    %v2210 = vsel %vm626, %v2208, %v2209
    %v2211 = vrot.slane %v2177, 7
    %v2212 = vrot.slane %v2211, 2
    %v2213 = vrot.slane %v2178, 7
    %v2214 = vsel %vm626, %v2212, %v2213
    %v2215 = vrot.slane %v2185, 7
    %v2216 = vrot.slane %v2215, 2
    %v2217 = vrot.slane %v2186, 7
    %v2218 = vsel %vm626, %v2216, %v2217
    %v2219 = vld [vmem:[#allocation2 + $0x200] sm:$0xf]
    %v2220 = vld [vmem:[#allocation2 + $0x204] sm:$0xf]
    %v2221 = vld [vmem:[#allocation2 + $0x208] sm:$0xf]
    %v2222 = vld [vmem:[#allocation2 + $0x20c] sm:$0xf]
    %v2223 = vld [vmem:[#allocation2 + $0x210] sm:$0xf]
    %v2224 = vld [vmem:[#allocation2 + $0x214] sm:$0xf]
    %v2225 = vld [vmem:[#allocation2 + $0x218] sm:$0xf]
    %v2226 = vld [vmem:[#allocation2 + $0x21c] sm:$0xf]
    %v2227 = vld [vmem:[#allocation2 + $0x220] sm:$0xf]
    %v2228 = vld [vmem:[#allocation2 + $0x224] sm:$0xf]
    %v2229 = vld [vmem:[#allocation2 + $0x228] sm:$0xf]
    %v2230 = vld [vmem:[#allocation2 + $0x22c] sm:$0xf]
    %v2231 = vld [vmem:[#allocation2 + $0x230] sm:$0xf]
    %v2232 = vld [vmem:[#allocation2 + $0x234] sm:$0xf]
    %v2233 = vld [vmem:[#allocation2 + $0x238] sm:$0xf]
    %v2234 = vld [vmem:[#allocation2 + $0x23c] sm:$0xf]
    %v2235 = vcombine.low %v2190, %v2194
    %v2236 = vcombine.low %v2198, %v2202
    %v2238 = vunpack.c.l.s4 1983009808
    %v2239 = vunpack.c.0.s8 %v2238
    %v2240 = vlaneseq
    %v2241 = vshrl.u32 %v2240, 7
    %v2242 = vsub.s32 %v2239, %v2241
    %v2243 = vrot.slane %v2235, %v2242
    %v2245 = vunpack.c.l.s4 1983009808
    %v2246 = vunpack.c.0.s8 %v2245
    %v2247 = vlaneseq
    %v2248 = vshrl.u32 %v2247, 7
    %v2249 = vsub.s32 %v2246, %v2248
    %v2250 = vrot.slane %v2236, %v2249
    %v2251 = vcombine.low %v2243, %v2250
    %v2252 = vcombine.low %v2206, %v2210
    %v2253 = vcombine.low %v2214, %v2218
    %v2255 = vunpack.c.l.s4 1983009808
    %v2256 = vunpack.c.0.s8 %v2255
    %v2257 = vlaneseq
    %v2258 = vshrl.u32 %v2257, 7
    %v2259 = vsub.s32 %v2256, %v2258
    %v2260 = vrot.slane %v2252, %v2259
    %v2262 = vunpack.c.l.s4 1983009808
    %v2263 = vunpack.c.0.s8 %v2262
    %v2264 = vlaneseq
    %v2265 = vshrl.u32 %v2264, 7
    %v2266 = vsub.s32 %v2263, %v2265
    %v2267 = vrot.slane %v2253, %v2266
    %v2268 = vcombine.low %v2260, %v2267
    %v2287 = vunpack.c.l.b16 %v2219
    %v2288 = vunpack.c.l.b16 %v2220
    %v2289 = vunpack.c.l.b16 %v2221
    %v2290 = vunpack.c.l.b16 %v2222
    %v2291 = vunpack.c.l.b16 %v2223
    %v2292 = vunpack.c.l.b16 %v2224
    %v2293 = vunpack.c.l.b16 %v2225
    %v2294 = vunpack.c.l.b16 %v2226
    %v2295 = vunpack.c.l.b16 %v2227
    %v2296 = vunpack.c.l.b16 %v2228
    %v2297 = vunpack.c.l.b16 %v2229
    %v2298 = vunpack.c.l.b16 %v2230
    %v2299 = vunpack.c.l.b16 %v2231
    %v2300 = vunpack.c.l.b16 %v2232
    %v2301 = vunpack.c.l.b16 %v2233
    %v2302 = vunpack.c.l.b16 %v2234
    %v2303 = vpack.c.b16 %v2288, %v2287
    %v2304 = vpack.c.b16 %v2290, %v2289
    %v2305 = vpack.c.b16 %v2292, %v2291
    %v2306 = vpack.c.b16 %v2294, %v2293
    %v2307 = vpack.c.b16 %v2296, %v2295
    %v2308 = vpack.c.b16 %v2298, %v2297
    %v2309 = vpack.c.b16 %v2300, %v2299
    %v2310 = vpack.c.b16 %v2302, %v2301
    %2319 = vmatprep.subr.bf16.mxu0 0
    %2320 = vmatpush1.bf16.msra.mxu0 %v2310
    %2321 = vmatprep.subr.bf16.mxu0 0
    %2322 = vmatpush1.bf16.msra.mxu0 %v2309
    %2323 = vmatprep.subr.bf16.mxu0 0
    %2324 = vmatpush1.bf16.msra.mxu0 %v2308
    %2325 = vmatprep.subr.bf16.mxu0 0
    %2326 = vmatpush1.bf16.msra.mxu0 %v2307
    %2327 = vmatprep.subr.bf16.mxu0 0
    %2328 = vmatpush1.bf16.msra.mxu0 %v2306
    %2329 = vmatprep.subr.bf16.mxu0 0
    %2330 = vmatpush1.bf16.msra.mxu0 %v2305
    %2331 = vmatprep.subr.bf16.mxu0 0
    %2332 = vmatpush1.bf16.msra.mxu0 %v2304
    %2333 = vmatprep.subr.bf16.mxu0 0
    %2334 = vmatpush1.bf16.msra.mxu0 %v2303
    %2335 = vmatprep.subr.bf16.mxu0 0
    %2336 = vmatpush2.bf16.msra.mxu0 0
    %2337 = vmatprep.subr.bf16.mxu0 0
    %2338 = vmatpush2.bf16.msra.mxu0 0
    %2339 = vmatprep.subr.bf16.mxu0 0
    %2340 = vmatpush2.bf16.msra.mxu0 0
    %2341 = vmatprep.subr.bf16.mxu0 0
    %2342 = vmatpush2.bf16.msra.mxu0 0
    %2343 = vmatprep.subr.bf16.mxu0 0
    %2344 = vmatpush2.bf16.msra.mxu0 0
    %2345 = vmatprep.subr.bf16.mxu0 0
    %2346 = vmatpush2.bf16.msra.mxu0 0
    %2347 = vmatprep.subr.bf16.mxu0 0
    %2348 = vmatpush2.bf16.msra.mxu0 0
    %2349 = vmatprep.subr.bf16.mxu0 0
    %2350 = vmatpush2.bf16.msra.mxu0 0
    %2351 = vmatprep.mubr.bf16.mxu0 0
    %2352 = vmatmul.mubr.bf16.gmra.mxu0 %v2251
    %v2353 = vpop.f32.mrf.mxu0
    %v2354 = vadd.f32 0.0, %v2353
    %v2355 = vpop.f32.mrf.mxu0
    %v2356 = vpop.f32.mrf.mxu0
    %v2357 = vadd.f32 0.0, %v2356
    %v2358 = vpop.f32.mrf.mxu0
    %2359 = vmatprep.mubr.bf16.mxu0 0
    %2360 = vmatmul.mubr.bf16.gmra.mxu0 %v2268
    %v2361 = vpop.f32.mrf.mxu0
    %v2362 = vadd.f32 0.0, %v2361
    %v2363 = vpop.f32.mrf.mxu0
    %v2364 = vpop.f32.mrf.mxu0
    %v2365 = vadd.f32 0.0, %v2364
    %v2366 = vpop.f32.mrf.mxu0
    %2367 = vdwg.mxu0
    %v2368 = vadd.f32 %v2103, %v2354
    %v2369 = vadd.f32 %v2104, %v2357
    %v2370 = vadd.f32 %v2105, %v2362
    %v2371 = vadd.f32 %v2106, %v2365
    %v2376 = vcombine.high %v2368, %v2368
    %v2377 = vcombine.high %v2369, %v2369
    %v2378 = vcombine.high %v2370, %v2370
    %v2379 = vcombine.high %v2371, %v2371
    %v2384 = vpack.c.bf16 %v2368, %v2368
    %v2385 = vpack.c.bf16 %v2376, %v2376
    %v2386 = vpack.c.bf16 %v2369, %v2369
    %v2387 = vpack.c.bf16 %v2377, %v2377
    %v2388 = vpack.c.bf16 %v2370, %v2370
    %v2389 = vpack.c.bf16 %v2378, %v2378
    %v2390 = vpack.c.bf16 %v2371, %v2371
    %v2391 = vpack.c.bf16 %v2379, %v2379
    %2392 = vst [vmem:[#allocation5] sm:$0x3] %v2384
    %2393 = vst [vmem:[#allocation5 + $0x2] sm:$0x3] %v2385
    %2394 = vst [vmem:[#allocation5 + $0x4] sm:$0x3] %v2386
    %2395 = vst [vmem:[#allocation5 + $0x6] sm:$0x3] %v2387
    %2396 = vst [vmem:[#allocation5 + $0x8] sm:$0x3] %v2388
    %2397 = vst [vmem:[#allocation5 + $0xa] sm:$0x3] %v2389
    %2398 = vst [vmem:[#allocation5 + $0xc] sm:$0x3] %v2390
    %2399 = vst [vmem:[#allocation5 + $0xe] sm:$0x3] %v2391
    // Predicated region
    $region14: #{tpu_custom_call.1} parent=1 // pred_check
      _
    $region15: #{tpu_custom_call.1} parent=1 // pred_check_branch
      %2401 = sbr.rel (0) target = $region17
    $region16: #{tpu_custom_call.1} parent=1 // pred_region
      %s2403 = ssub.s32 256, 256
      %2404 = vsyncadd [#allocation4], %s2403
      %s2405 = sshll.u32 [#allocation5], 4
      %s2406 = int_to_ptr.vmem [resolvable:$true] %s2405
      %2411 = dma.vmem_to_hbm [thread:$0]  %s2406, 256, %s2, [#allocation4], 32, 32, 2
    $region17: #{tpu_custom_call.1} parent=1 // pred_fallthru
      _
    // Predicated region
    $region18: #{tpu_custom_call.1} parent=1 // pred_check
      _
    $region19: #{tpu_custom_call.1} parent=1 // pred_check_branch
      %2413 = sbr.rel (0) target = $region21
    $region20: #{tpu_custom_call.1} parent=1 // pred_region
      %2414 = dma.done [#allocation4], 256
    $region21: #{tpu_custom_call.1} parent=1 // pred_fallthru
      _
    %2415 = vsyncpa [#allocation3], 1
    %2416 = vsyncpa [#allocation4], 1

</llo_original>
